<compile_context>
chip_gen: v5e
topology: v5e:2x2
jax: 0.10.0
libtpu: 0.0.40
codegen_flags: <defaults>
</compile_context>

<pallas_src>
import math

import jax
import jax.numpy as jnp
from jax.experimental import pallas as pl
from jax.experimental.pallas import tpu as pltpu

D_MODEL = 32
HEADS = 1
NUM_EMB = 21
MAX_B_TILE = 512          # batch rows per grid step for large B (multiple of 8)


def _pick_b_tile(batch):
    r = ((batch + 7) // 8) * 8
    return r if r <= MAX_B_TILE else MAX_B_TILE


def _logistic(x):
    # logistic(x, c=1, a=20, b=e) = 1 / (1 + 20 * exp(-x)); clamp for f32 safety.
    t = 1.0 + 20.0 * jnp.exp(-jnp.maximum(x, -60.0))
    return pl.reciprocal(t, approx=True)


def _sigmoid(x):
    t = 1.0 + jnp.exp(-jnp.maximum(x, -60.0))
    return pl.reciprocal(t, approx=True)


def fraud_kernel(x1_ref, x2_ref, emb_ref,
                 wqkv_ref, bqkv_ref, wout_ref, bout_ref, wff_ref, bff_ref,
                 wpool_ref, bpool_ref, wq2_ref, bq2_ref, wkv2_ref, bkv2_ref,
                 wfc_ref, bfc_ref, wfc1_ref, bfc1_ref, wfin_ref, bfin_ref,
                 preds_ref):
    Bt, T = x1_ref.shape
    D = emb_ref.shape[1]              # 32
    n_emb = emb_ref.shape[0] // 2     # 21
    N = Bt * T

    def mm(x, w_ref, b_ref):
        # bf16 MXU operands, f32 accumulate, f32 (1, out) bias row.
        return jnp.dot(x.astype(jnp.bfloat16), w_ref[...],
                       preferred_element_type=jnp.float32) + b_ref[...]

    # --- fused embedding gather + concat: one-hot(x1 | x2+21) @ [emb1|emb2] ---
    iota = jax.lax.broadcasted_iota(jnp.int32, (Bt, T, 2 * n_emb), 2)
    hit = (iota == x1_ref[...][:, :, None]) | (iota == x2_ref[...][:, :, None] + n_emb)
    onehot = jnp.where(hit, 1.0, 0.0).reshape(N, 2 * n_emb)
    cat = jnp.dot(onehot, emb_ref[...], preferred_element_type=jnp.float32)   # (N, D)

    # --- EncoderLayer: MultiHeadAttention (heads=1) with logistic "softmax" ---
    qkv = mm(cat, wqkv_ref, bqkv_ref)                     # (N, 3D), fused q|k|v
    q = qkv[:, 0:D].reshape(Bt, T, D)
    k = qkv[:, D:2 * D].reshape(Bt, T, D)
    v = qkv[:, 2 * D:3 * D].reshape(Bt, T, D)
    scale = 1.0 / math.sqrt(D // HEADS)
    scores = jnp.einsum('btd,bsd->bts', q.astype(jnp.bfloat16),
                        k.astype(jnp.bfloat16),
                        preferred_element_type=jnp.float32) * scale
    scores = _logistic(scores)                            # (Bt, T, T)
    attn = jnp.einsum('bts,bsd->btd', scores.astype(jnp.bfloat16),
                      v.astype(jnp.bfloat16),
                      preferred_element_type=jnp.float32)
    attn = mm(attn.reshape(N, D), wout_ref, bout_ref)     # attn.out projection
    feat = jnp.maximum(mm(attn, wff_ref, bff_ref), 0.0)   # FeedForward: relu(linear_1)

    # --- multi_attention pooling (query folded into key weights at pack time) ---
    pool = mm(feat, wpool_ref, bpool_ref)                 # (N, D+1): value | keys@query
    value = pool[:, 0:D].reshape(Bt, T, D)
    wts = _logistic(pool[:, D:D + 1]).reshape(Bt, T, 1)
    ag = jnp.sum(value * wts, axis=1)                     # (Bt, D)

    # --- second attention-style pooling ---
    # TODO(synk): reference applies ag.squeeze() which would also drop the batch
    # dim when B == 1; we keep the batch-preserving (B, D) behavior.
    q2 = mm(ag, wq2_ref, bq2_ref)                         # (Bt, D)
    kv2 = mm(feat, wkv2_ref, bkv2_ref)                    # (N, 2D): k2 | v2
    k2 = kv2[:, 0:D].reshape(Bt, T, D)
    v2 = kv2[:, D:2 * D].reshape(Bt, T, D)
    w2 = _sigmoid(jnp.sum(k2 * q2[:, None, :], axis=-1, keepdims=True))  # (Bt, T, 1)
    ag2 = jnp.sum(v2 * w2, axis=1)                        # (Bt, D)

    # --- MLP head (final matmul emitted transposed -> lane-dense output row) ---
    fc = jnp.maximum(mm(ag2, wfc_ref, bfc_ref), 0.0)      # (Bt, 4D)
    fc = jnp.maximum(mm(fc, wfc1_ref, bfc1_ref), 0.0)     # (Bt, 4D)
    logits = jnp.einsum('of,bf->ob', wfin_ref[...], fc.astype(jnp.bfloat16),
                        preferred_element_type=jnp.float32) + bfin_ref[...]  # (1, Bt)
    preds_ref[...] = _sigmoid(logits).reshape(1, 1, Bt)


def init_params(seed=0):
    d = D_MODEL
    keys = iter(jax.random.split(jax.random.PRNGKey(seed), 64))

    def linear(fan_in, fan_out):
        bound = 1.0 / math.sqrt(fan_in)
        w = jax.random.uniform(next(keys), (fan_in, fan_out), jnp.float32, -bound, bound)
        b = jax.random.uniform(next(keys), (fan_out,), jnp.float32, -bound, bound)
        return w, b

    emb1 = jax.random.normal(next(keys), (NUM_EMB, d // 2), jnp.float32)
    emb2 = jax.random.normal(next(keys), (NUM_EMB, d // 2), jnp.float32)
    # Combined gather table: one-hot(x1 | x2+21) @ emb == concat([emb1[x1], emb2[x2]], -1)
    emb = jnp.zeros((2 * NUM_EMB, d), jnp.float32)
    emb = emb.at[:NUM_EMB, :d // 2].set(emb1)
    emb = emb.at[NUM_EMB:, d // 2:].set(emb2)

    wq, bq = linear(d, d)
    wk, bk = linear(d, d)
    wv, bv = linear(d, d)
    wo, bo = linear(d, d)
    wff, bff = linear(d, d)                               # ff.linear_1
    wval, bval = linear(d, d)                             # mula.value_extract
    wkey, bkey = linear(d, d)                             # mula.key_extract
    query = jax.random.uniform(next(keys), (d, 1), jnp.float32,
                               -1.0 / math.sqrt(d), 1.0 / math.sqrt(d))
    wq2, bq2 = linear(d, d)
    wk2, bk2 = linear(d, d)
    wv2, bv2 = linear(d, d)
    wfc, bfc = linear(d, 4 * d)
    wfc1, bfc1 = linear(4 * d, 4 * d)
    wfin, bfin = linear(4 * d, 1)

    def w16(x):
        return x.astype(jnp.bfloat16)

    def brow(*bs):
        return jnp.concatenate(bs).reshape(1, -1).astype(jnp.float32)

    # TODO(synk): initial_linear, Norm layers, ff.linear_2 and the dropouts exist in
    # __init__ but are never used by the reference forward; they are omitted.
    return dict(
        emb=emb,                                                     # keep f32: exact gather
        wqkv=w16(jnp.concatenate([wq, wk, wv], axis=1)), bqkv=brow(bq, bk, bv),
        wout=w16(wo), bout=brow(bo),
        wff=w16(wff), bff=brow(bff),
        # fold the (d,1) query into the key path: sim = feat @ (Wkey @ query) + bkey @ query
        wpool=w16(jnp.concatenate([wval, jnp.dot(wkey, query)], axis=1)),
        bpool=brow(bval, jnp.dot(bkey, query)),
        wq2=w16(wq2), bq2=brow(bq2),
        wkv2=w16(jnp.concatenate([wk2, wv2], axis=1)), bkv2=brow(bk2, bv2),
        wfc=w16(wfc), bfc=brow(bfc),
        wfc1=w16(wfc1), bfc1=brow(bfc1),
        wfin=w16(wfin.T), bfin=brow(bfin),                # final layer stored transposed (1, 4d)
    )


_PARAM_ORDER = ('emb', 'wqkv', 'bqkv', 'wout', 'bout', 'wff', 'bff',
                'wpool', 'bpool', 'wq2', 'bq2', 'wkv2', 'bkv2',
                'wfc', 'bfc', 'wfc1', 'bfc1', 'wfin', 'bfin')


@jax.jit
def forward(params, x1, x2):
    B, T = x1.shape
    b_tile = _pick_b_tile(B)
    padded_b = ((B + b_tile - 1) // b_tile) * b_tile
    if padded_b != B:
        x1 = jnp.pad(x1, ((0, padded_b - B), (0, 0)))
        x2 = jnp.pad(x2, ((0, padded_b - B), (0, 0)))
    num_tiles = padded_b // b_tile

    weights = [params[k] for k in _PARAM_ORDER]
    id_spec = pl.BlockSpec((b_tile, T), lambda i: (i, 0))
    const_specs = [pl.BlockSpec(w.shape, lambda i: (0, 0)) for w in weights]

    # Advisory cost for XLA scheduling around the custom call.
    n = padded_b * T
    d = D_MODEL
    flops = 2 * n * (2 * NUM_EMB * d + d * 3 * d + 2 * d * d + d * (d + 1) + d * 2 * d)
    flops += 2 * padded_b * (2 * T * T * d + d * d + d * 4 * d + 16 * d * d + 4 * d)
    transcendentals = padded_b * T * T + 2 * n + padded_b
    bytes_accessed = (2 * padded_b * T * 4 + padded_b * 4
                      + sum(int(w.size) * w.dtype.itemsize for w in weights))

    preds = pl.pallas_call(
        fraud_kernel,
        grid=(num_tiles,),
        in_specs=[id_spec, id_spec] + const_specs,
        out_specs=pl.BlockSpec((1, 1, b_tile), lambda i: (i, 0, 0)),
        out_shape=jax.ShapeDtypeStruct((num_tiles, 1, b_tile), jnp.float32),
        compiler_params=pltpu.CompilerParams(
            dimension_semantics=("parallel",)),
        cost_estimate=pl.CostEstimate(flops=int(flops),
                                      transcendentals=int(transcendentals),
                                      bytes_accessed=int(bytes_accessed)),
    )(x1, x2, *weights)
    return preds.reshape(padded_b)[:B]            # matches torch preds.squeeze()


if __name__ == "__main__":
    B, T = 2, 8
    key = jax.random.PRNGKey(0)
    k1, k2 = jax.random.split(key)
    x1 = jax.random.randint(k1, (B, T), 0, NUM_EMB, dtype=jnp.int32)
    x2 = jax.random.randint(k2, (B, T), 0, NUM_EMB, dtype=jnp.int32)
    # x3 is an unused argument of the reference forward (return_w=False path).

    params = init_params(0)
    preds = forward(params, x1, x2)
    jax.block_until_ready(preds)
    assert preds.shape == (B,)
    assert bool(jnp.all(jnp.isfinite(preds)))
    print("KERNEL_OK")
</pallas_src>

<mosaic_0001>
module attributes {stable_mosaic.version = 11 : i64} {
  func.func @fraud_kernel(%arg0: i32, %arg1: memref<8x8xi32, #tpu.memory_space<vmem>>, %arg2: memref<8x8xi32, #tpu.memory_space<vmem>>, %arg3: memref<42x32xf32, #tpu.memory_space<vmem>>, %arg4: memref<32x96xbf16, #tpu.memory_space<vmem>>, %arg5: memref<1x96xf32, #tpu.memory_space<vmem>>, %arg6: memref<32x32xbf16, #tpu.memory_space<vmem>>, %arg7: memref<1x32xf32, #tpu.memory_space<vmem>>, %arg8: memref<32x32xbf16, #tpu.memory_space<vmem>>, %arg9: memref<1x32xf32, #tpu.memory_space<vmem>>, %arg10: memref<32x33xbf16, #tpu.memory_space<vmem>>, %arg11: memref<1x33xf32, #tpu.memory_space<vmem>>, %arg12: memref<32x32xbf16, #tpu.memory_space<vmem>>, %arg13: memref<1x32xf32, #tpu.memory_space<vmem>>, %arg14: memref<32x64xbf16, #tpu.memory_space<vmem>>, %arg15: memref<1x64xf32, #tpu.memory_space<vmem>>, %arg16: memref<32x128xbf16, #tpu.memory_space<vmem>>, %arg17: memref<1x128xf32, #tpu.memory_space<vmem>>, %arg18: memref<128x128xbf16, #tpu.memory_space<vmem>>, %arg19: memref<1x128xf32, #tpu.memory_space<vmem>>, %arg20: memref<1x128xbf16, #tpu.memory_space<vmem>>, %arg21: memref<1x1xf32, #tpu.memory_space<vmem>>, %arg22: memref<1x1x8xf32, #tpu.memory_space<vmem>>) attributes {dimension_semantics = [#tpu.dimension_semantics<parallel>], iteration_bounds = array<i64: 1>, scalar_prefetch = 0 : i64, scratch_operands = 0 : i64, tpu.core_type = #tpu.core_type<tc>, window_params = [{transform_indices = @transform_0, window_bounds = array<i64: 8, 8>}, {transform_indices = @transform_1, window_bounds = array<i64: 8, 8>}, {pipeline_mode = #tpu.pipeline_mode<synchronous>, transform_indices = @transform_2, window_bounds = array<i64: 42, 32>}, {pipeline_mode = #tpu.pipeline_mode<synchronous>, transform_indices = @transform_3, window_bounds = array<i64: 32, 96>}, {pipeline_mode = #tpu.pipeline_mode<synchronous>, transform_indices = @transform_4, window_bounds = array<i64: 1, 96>}, {pipeline_mode = #tpu.pipeline_mode<synchronous>, transform_indices = @transform_5, window_bounds = array<i64: 32, 32>}, {pipeline_mode = #tpu.pipeline_mode<synchronous>, transform_indices = @transform_6, window_bounds = array<i64: 1, 32>}, {pipeline_mode = #tpu.pipeline_mode<synchronous>, transform_indices = @transform_7, window_bounds = array<i64: 32, 32>}, {pipeline_mode = #tpu.pipeline_mode<synchronous>, transform_indices = @transform_8, window_bounds = array<i64: 1, 32>}, {pipeline_mode = #tpu.pipeline_mode<synchronous>, transform_indices = @transform_9, window_bounds = array<i64: 32, 33>}, {pipeline_mode = #tpu.pipeline_mode<synchronous>, transform_indices = @transform_10, window_bounds = array<i64: 1, 33>}, {pipeline_mode = #tpu.pipeline_mode<synchronous>, transform_indices = @transform_11, window_bounds = array<i64: 32, 32>}, {pipeline_mode = #tpu.pipeline_mode<synchronous>, transform_indices = @transform_12, window_bounds = array<i64: 1, 32>}, {pipeline_mode = #tpu.pipeline_mode<synchronous>, transform_indices = @transform_13, window_bounds = array<i64: 32, 64>}, {pipeline_mode = #tpu.pipeline_mode<synchronous>, transform_indices = @transform_14, window_bounds = array<i64: 1, 64>}, {pipeline_mode = #tpu.pipeline_mode<synchronous>, transform_indices = @transform_15, window_bounds = array<i64: 32, 128>}, {pipeline_mode = #tpu.pipeline_mode<synchronous>, transform_indices = @transform_16, window_bounds = array<i64: 1, 128>}, {pipeline_mode = #tpu.pipeline_mode<synchronous>, transform_indices = @transform_17, window_bounds = array<i64: 128, 128>}, {pipeline_mode = #tpu.pipeline_mode<synchronous>, transform_indices = @transform_18, window_bounds = array<i64: 1, 128>}, {pipeline_mode = #tpu.pipeline_mode<synchronous>, transform_indices = @transform_19, window_bounds = array<i64: 1, 128>}, {pipeline_mode = #tpu.pipeline_mode<synchronous>, transform_indices = @transform_20, window_bounds = array<i64: 1, 1>}, {transform_indices = @transform_21, window_bounds = array<i64: 1, 1, 8>}]} {
    %0 = tpu.iota {dimensions = array<i32: 2>} : vector<8x8x42xi32>
    %c0 = arith.constant 0 : index
    %c0_0 = arith.constant 0 : index
    %1 = vector.load %arg1[%c0, %c0_0] : memref<8x8xi32, #tpu.memory_space<vmem>>, vector<8x8xi32>
    %2 = vector.shape_cast %1 : vector<8x8xi32> to vector<8x8x1xi32>
    %3 = vector.broadcast %2 : vector<8x8x1xi32> to vector<8x8x42xi32>
    %4 = arith.cmpi eq, %0, %3 : vector<8x8x42xi32>
    %c0_1 = arith.constant 0 : index
    %c0_2 = arith.constant 0 : index
    %5 = vector.load %arg2[%c0_1, %c0_2] : memref<8x8xi32, #tpu.memory_space<vmem>>, vector<8x8xi32>
    %6 = vector.shape_cast %5 : vector<8x8xi32> to vector<8x8x1xi32>
    %c21_i32 = arith.constant 21 : i32
    %7 = vector.broadcast %c21_i32 : i32 to vector<8x8x1xi32>
    %8 = arith.addi %6, %7 : vector<8x8x1xi32>
    %9 = vector.broadcast %8 : vector<8x8x1xi32> to vector<8x8x42xi32>
    %10 = arith.cmpi eq, %0, %9 : vector<8x8x42xi32>
    %11 = arith.ori %4, %10 : vector<8x8x42xi1>
    %cst = arith.constant 1.000000e+00 : f32
    %cst_3 = arith.constant 0.000000e+00 : f32
    %12 = vector.broadcast %cst : f32 to vector<8x8x42xf32>
    %13 = vector.broadcast %cst_3 : f32 to vector<8x8x42xf32>
    %14 = arith.select %11, %12, %13 : vector<8x8x42xi1>, vector<8x8x42xf32>
    %15 = vector.shape_cast %14 : vector<8x8x42xf32> to vector<64x42xf32>
    %c0_4 = arith.constant 0 : index
    %c0_5 = arith.constant 0 : index
    %16 = vector.load %arg3[%c0_4, %c0_5] : memref<42x32xf32, #tpu.memory_space<vmem>>, vector<42x32xf32>
    %cst_6 = arith.constant dense<0.000000e+00> : vector<64x32xf32>
    %17 = tpu.matmul %15, %16, %cst_6 {dimension_numbers = #tpu.dot_dimension_numbers<[1], [0], [0], [1], [0, 0, 1, 1], [], []>} : vector<64x42xf32>, vector<42x32xf32>, vector<64x32xf32> -> vector<64x32xf32>
    %18 = arith.truncf %17 : vector<64x32xf32> to vector<64x32xbf16>
    %c0_7 = arith.constant 0 : index
    %c0_8 = arith.constant 0 : index
    %19 = vector.load %arg4[%c0_7, %c0_8] : memref<32x96xbf16, #tpu.memory_space<vmem>>, vector<32x96xbf16>
    %cst_9 = arith.constant dense<0.000000e+00> : vector<64x96xf32>
    %20 = tpu.matmul %18, %19, %cst_9 {dimension_numbers = #tpu.dot_dimension_numbers<[1], [0], [0], [1], [0, 0, 1, 1], [], []>} : vector<64x32xbf16>, vector<32x96xbf16>, vector<64x96xf32> -> vector<64x96xf32>
    %c0_10 = arith.constant 0 : index
    %c0_11 = arith.constant 0 : index
    %21 = vector.load %arg5[%c0_10, %c0_11] : memref<1x96xf32, #tpu.memory_space<vmem>>, vector<1x96xf32>
    %22 = vector.broadcast %21 : vector<1x96xf32> to vector<64x96xf32>
    %23 = arith.addf %20, %22 : vector<64x96xf32>
    %24 = vector.extract_strided_slice %23 {offsets = [0, 0], sizes = [64, 32], strides = [1, 1]} : vector<64x96xf32> to vector<64x32xf32>
    %25 = vector.shape_cast %24 : vector<64x32xf32> to vector<8x8x32xf32>
    %26 = vector.extract_strided_slice %23 {offsets = [0, 32], sizes = [64, 32], strides = [1, 1]} : vector<64x96xf32> to vector<64x32xf32>
    %27 = vector.shape_cast %26 : vector<64x32xf32> to vector<8x8x32xf32>
    %28 = vector.extract_strided_slice %23 {offsets = [0, 64], sizes = [64, 32], strides = [1, 1]} : vector<64x96xf32> to vector<64x32xf32>
    %29 = vector.shape_cast %28 : vector<64x32xf32> to vector<8x8x32xf32>
    %30 = arith.truncf %25 : vector<8x8x32xf32> to vector<8x8x32xbf16>
    %31 = arith.truncf %27 : vector<8x8x32xf32> to vector<8x8x32xbf16>
    "tpu.trace_start"() <{level = 10 : i32, message = "btd,bsd->bts"}> : () -> ()
    %cst_12 = arith.constant dense<0.000000e+00> : vector<8x8x8xf32>
    %32 = tpu.matmul %30, %31, %cst_12 {dimension_numbers = #tpu.dot_dimension_numbers<[2], [2], [1], [1], [0, 0, 0, 1, 1, 1], [0], [0]>} : vector<8x8x32xbf16>, vector<8x8x32xbf16>, vector<8x8x8xf32> -> vector<8x8x8xf32>
    "tpu.trace_stop"() : () -> ()
    %cst_13 = arith.constant 0.176776692 : f32
    %33 = vector.broadcast %cst_13 : f32 to vector<8x8x8xf32>
    %34 = arith.mulf %32, %33 : vector<8x8x8xf32>
    %cst_14 = arith.constant -6.000000e+01 : f32
    %35 = vector.broadcast %cst_14 : f32 to vector<8x8x8xf32>
    %36 = arith.maximumf %34, %35 : vector<8x8x8xf32>
    %cst_15 = arith.constant 0.000000e+00 : f32
    %37 = vector.broadcast %cst_15 : f32 to vector<8x8x8xf32>
    %38 = arith.subf %37, %36 : vector<8x8x8xf32>
    %39 = math.exp %38 : vector<8x8x8xf32>
    %cst_16 = arith.constant 2.000000e+01 : f32
    %40 = vector.broadcast %cst_16 : f32 to vector<8x8x8xf32>
    %41 = arith.mulf %40, %39 : vector<8x8x8xf32>
    %cst_17 = arith.constant 1.000000e+00 : f32
    %42 = vector.broadcast %cst_17 : f32 to vector<8x8x8xf32>
    %43 = arith.addf %42, %41 : vector<8x8x8xf32>
    %44 = tpu.reciprocal %43 {approx = true} : vector<8x8x8xf32> -> vector<8x8x8xf32>
    %45 = arith.truncf %44 : vector<8x8x8xf32> to vector<8x8x8xbf16>
    %46 = arith.truncf %29 : vector<8x8x32xf32> to vector<8x8x32xbf16>
    "tpu.trace_start"() <{level = 10 : i32, message = "bts,bsd->btd"}> : () -> ()
    %cst_18 = arith.constant dense<0.000000e+00> : vector<8x8x32xf32>
    %47 = tpu.matmul %45, %46, %cst_18 {dimension_numbers = #tpu.dot_dimension_numbers<[2], [1], [1], [2], [0, 0, 0, 1, 1, 2], [0], [0]>} : vector<8x8x8xbf16>, vector<8x8x32xbf16>, vector<8x8x32xf32> -> vector<8x8x32xf32>
    "tpu.trace_stop"() : () -> ()
    %48 = vector.shape_cast %47 : vector<8x8x32xf32> to vector<64x32xf32>
    %49 = arith.truncf %48 : vector<64x32xf32> to vector<64x32xbf16>
    %c0_19 = arith.constant 0 : index
    %c0_20 = arith.constant 0 : index
    %50 = vector.load %arg6[%c0_19, %c0_20] : memref<32x32xbf16, #tpu.memory_space<vmem>>, vector<32x32xbf16>
    %cst_21 = arith.constant dense<0.000000e+00> : vector<64x32xf32>
    %51 = tpu.matmul %49, %50, %cst_21 {dimension_numbers = #tpu.dot_dimension_numbers<[1], [0], [0], [1], [0, 0, 1, 1], [], []>} : vector<64x32xbf16>, vector<32x32xbf16>, vector<64x32xf32> -> vector<64x32xf32>
    %c0_22 = arith.constant 0 : index
    %c0_23 = arith.constant 0 : index
    %52 = vector.load %arg7[%c0_22, %c0_23] : memref<1x32xf32, #tpu.memory_space<vmem>>, vector<1x32xf32>
    %53 = vector.broadcast %52 : vector<1x32xf32> to vector<64x32xf32>
    %54 = arith.addf %51, %53 : vector<64x32xf32>
    %55 = arith.truncf %54 : vector<64x32xf32> to vector<64x32xbf16>
    %c0_24 = arith.constant 0 : index
    %c0_25 = arith.constant 0 : index
    %56 = vector.load %arg8[%c0_24, %c0_25] : memref<32x32xbf16, #tpu.memory_space<vmem>>, vector<32x32xbf16>
    %cst_26 = arith.constant dense<0.000000e+00> : vector<64x32xf32>
    %57 = tpu.matmul %55, %56, %cst_26 {dimension_numbers = #tpu.dot_dimension_numbers<[1], [0], [0], [1], [0, 0, 1, 1], [], []>} : vector<64x32xbf16>, vector<32x32xbf16>, vector<64x32xf32> -> vector<64x32xf32>
    %c0_27 = arith.constant 0 : index
    %c0_28 = arith.constant 0 : index
    %58 = vector.load %arg9[%c0_27, %c0_28] : memref<1x32xf32, #tpu.memory_space<vmem>>, vector<1x32xf32>
    %59 = vector.broadcast %58 : vector<1x32xf32> to vector<64x32xf32>
    %60 = arith.addf %57, %59 : vector<64x32xf32>
    %cst_29 = arith.constant 0.000000e+00 : f32
    %61 = vector.broadcast %cst_29 : f32 to vector<64x32xf32>
    %62 = arith.maximumf %60, %61 : vector<64x32xf32>
    %63 = arith.truncf %62 : vector<64x32xf32> to vector<64x32xbf16>
    %c0_30 = arith.constant 0 : index
    %c0_31 = arith.constant 0 : index
    %64 = vector.load %arg10[%c0_30, %c0_31] : memref<32x33xbf16, #tpu.memory_space<vmem>>, vector<32x33xbf16>
    %cst_32 = arith.constant dense<0.000000e+00> : vector<64x33xf32>
    %65 = tpu.matmul %63, %64, %cst_32 {dimension_numbers = #tpu.dot_dimension_numbers<[1], [0], [0], [1], [0, 0, 1, 1], [], []>} : vector<64x32xbf16>, vector<32x33xbf16>, vector<64x33xf32> -> vector<64x33xf32>
    %c0_33 = arith.constant 0 : index
    %c0_34 = arith.constant 0 : index
    %66 = vector.load %arg11[%c0_33, %c0_34] : memref<1x33xf32, #tpu.memory_space<vmem>>, vector<1x33xf32>
    %67 = vector.broadcast %66 : vector<1x33xf32> to vector<64x33xf32>
    %68 = arith.addf %65, %67 : vector<64x33xf32>
    %69 = vector.extract_strided_slice %68 {offsets = [0, 0], sizes = [64, 32], strides = [1, 1]} : vector<64x33xf32> to vector<64x32xf32>
    %70 = vector.shape_cast %69 : vector<64x32xf32> to vector<8x8x32xf32>
    %71 = vector.extract_strided_slice %68 {offsets = [0, 32], sizes = [64, 1], strides = [1, 1]} : vector<64x33xf32> to vector<64x1xf32>
    %cst_35 = arith.constant -6.000000e+01 : f32
    %72 = vector.broadcast %cst_35 : f32 to vector<64x1xf32>
    %73 = arith.maximumf %71, %72 : vector<64x1xf32>
    %cst_36 = arith.constant 0.000000e+00 : f32
    %74 = vector.broadcast %cst_36 : f32 to vector<64x1xf32>
    %75 = arith.subf %74, %73 : vector<64x1xf32>
    %76 = math.exp %75 : vector<64x1xf32>
    %cst_37 = arith.constant 2.000000e+01 : f32
    %77 = vector.broadcast %cst_37 : f32 to vector<64x1xf32>
    %78 = arith.mulf %77, %76 : vector<64x1xf32>
    %cst_38 = arith.constant 1.000000e+00 : f32
    %79 = vector.broadcast %cst_38 : f32 to vector<64x1xf32>
    %80 = arith.addf %79, %78 : vector<64x1xf32>
    %81 = tpu.reciprocal %80 {approx = true} : vector<64x1xf32> -> vector<64x1xf32>
    %82 = vector.shape_cast %81 : vector<64x1xf32> to vector<8x8x1xf32>
    %83 = vector.broadcast %82 : vector<8x8x1xf32> to vector<8x8x32xf32>
    %84 = arith.mulf %70, %83 : vector<8x8x32xf32>
    %cst_39 = arith.constant dense<0.000000e+00> : vector<8x32xf32>
    %85 = vector.multi_reduction <add>, %84, %cst_39 [1] : vector<8x8x32xf32> to vector<8x32xf32>
    %86 = arith.truncf %85 : vector<8x32xf32> to vector<8x32xbf16>
    %c0_40 = arith.constant 0 : index
    %c0_41 = arith.constant 0 : index
    %87 = vector.load %arg12[%c0_40, %c0_41] : memref<32x32xbf16, #tpu.memory_space<vmem>>, vector<32x32xbf16>
    %cst_42 = arith.constant dense<0.000000e+00> : vector<8x32xf32>
    %88 = tpu.matmul %86, %87, %cst_42 {dimension_numbers = #tpu.dot_dimension_numbers<[1], [0], [0], [1], [0, 0, 1, 1], [], []>} : vector<8x32xbf16>, vector<32x32xbf16>, vector<8x32xf32> -> vector<8x32xf32>
    %c0_43 = arith.constant 0 : index
    %c0_44 = arith.constant 0 : index
    %89 = vector.load %arg13[%c0_43, %c0_44] : memref<1x32xf32, #tpu.memory_space<vmem>>, vector<1x32xf32>
    %90 = vector.broadcast %89 : vector<1x32xf32> to vector<8x32xf32>
    %91 = arith.addf %88, %90 : vector<8x32xf32>
    %92 = arith.truncf %62 : vector<64x32xf32> to vector<64x32xbf16>
    %c0_45 = arith.constant 0 : index
    %c0_46 = arith.constant 0 : index
    %93 = vector.load %arg14[%c0_45, %c0_46] : memref<32x64xbf16, #tpu.memory_space<vmem>>, vector<32x64xbf16>
    %cst_47 = arith.constant dense<0.000000e+00> : vector<64x64xf32>
    %94 = tpu.matmul %92, %93, %cst_47 {dimension_numbers = #tpu.dot_dimension_numbers<[1], [0], [0], [1], [0, 0, 1, 1], [], []>} : vector<64x32xbf16>, vector<32x64xbf16>, vector<64x64xf32> -> vector<64x64xf32>
    %c0_48 = arith.constant 0 : index
    %c0_49 = arith.constant 0 : index
    %95 = vector.load %arg15[%c0_48, %c0_49] : memref<1x64xf32, #tpu.memory_space<vmem>>, vector<1x64xf32>
    %96 = vector.broadcast %95 : vector<1x64xf32> to vector<64x64xf32>
    %97 = arith.addf %94, %96 : vector<64x64xf32>
    %98 = vector.extract_strided_slice %97 {offsets = [0, 0], sizes = [64, 32], strides = [1, 1]} : vector<64x64xf32> to vector<64x32xf32>
    %99 = vector.shape_cast %98 : vector<64x32xf32> to vector<8x8x32xf32>
    %100 = vector.extract_strided_slice %97 {offsets = [0, 32], sizes = [64, 32], strides = [1, 1]} : vector<64x64xf32> to vector<64x32xf32>
    %101 = vector.shape_cast %100 : vector<64x32xf32> to vector<8x8x32xf32>
    %102 = vector.shape_cast %91 : vector<8x32xf32> to vector<8x1x32xf32>
    %103 = vector.broadcast %102 : vector<8x1x32xf32> to vector<8x8x32xf32>
    %104 = arith.mulf %99, %103 : vector<8x8x32xf32>
    %cst_50 = arith.constant dense<0.000000e+00> : vector<8x8xf32>
    %105 = vector.multi_reduction <add>, %104, %cst_50 [2] : vector<8x8x32xf32> to vector<8x8xf32>
    %106 = vector.shape_cast %105 : vector<8x8xf32> to vector<8x8x1xf32>
    %cst_51 = arith.constant -6.000000e+01 : f32
    %107 = vector.broadcast %cst_51 : f32 to vector<8x8x1xf32>
    %108 = arith.maximumf %106, %107 : vector<8x8x1xf32>
    %cst_52 = arith.constant 0.000000e+00 : f32
    %109 = vector.broadcast %cst_52 : f32 to vector<8x8x1xf32>
    %110 = arith.subf %109, %108 : vector<8x8x1xf32>
    %111 = math.exp %110 : vector<8x8x1xf32>
    %cst_53 = arith.constant 1.000000e+00 : f32
    %112 = vector.broadcast %cst_53 : f32 to vector<8x8x1xf32>
    %113 = arith.addf %112, %111 : vector<8x8x1xf32>
    %114 = tpu.reciprocal %113 {approx = true} : vector<8x8x1xf32> -> vector<8x8x1xf32>
    %115 = vector.broadcast %114 : vector<8x8x1xf32> to vector<8x8x32xf32>
    %116 = arith.mulf %101, %115 : vector<8x8x32xf32>
    %cst_54 = arith.constant dense<0.000000e+00> : vector<8x32xf32>
    %117 = vector.multi_reduction <add>, %116, %cst_54 [1] : vector<8x8x32xf32> to vector<8x32xf32>
    %118 = arith.truncf %117 : vector<8x32xf32> to vector<8x32xbf16>
    %c0_55 = arith.constant 0 : index
    %c0_56 = arith.constant 0 : index
    %119 = vector.load %arg16[%c0_55, %c0_56] : memref<32x128xbf16, #tpu.memory_space<vmem>>, vector<32x128xbf16>
    %cst_57 = arith.constant dense<0.000000e+00> : vector<8x128xf32>
    %120 = tpu.matmul %118, %119, %cst_57 {dimension_numbers = #tpu.dot_dimension_numbers<[1], [0], [0], [1], [0, 0, 1, 1], [], []>} : vector<8x32xbf16>, vector<32x128xbf16>, vector<8x128xf32> -> vector<8x128xf32>
    %c0_58 = arith.constant 0 : index
    %c0_59 = arith.constant 0 : index
    %121 = vector.load %arg17[%c0_58, %c0_59] : memref<1x128xf32, #tpu.memory_space<vmem>>, vector<1x128xf32>
    %122 = vector.broadcast %121 : vector<1x128xf32> to vector<8x128xf32>
    %123 = arith.addf %120, %122 : vector<8x128xf32>
    %cst_60 = arith.constant 0.000000e+00 : f32
    %124 = vector.broadcast %cst_60 : f32 to vector<8x128xf32>
    %125 = arith.maximumf %123, %124 : vector<8x128xf32>
    %126 = arith.truncf %125 : vector<8x128xf32> to vector<8x128xbf16>
    %c0_61 = arith.constant 0 : index
    %c0_62 = arith.constant 0 : index
    %127 = vector.load %arg18[%c0_61, %c0_62] : memref<128x128xbf16, #tpu.memory_space<vmem>>, vector<128x128xbf16>
    %cst_63 = arith.constant dense<0.000000e+00> : vector<8x128xf32>
    %128 = tpu.matmul %126, %127, %cst_63 {dimension_numbers = #tpu.dot_dimension_numbers<[1], [0], [0], [1], [0, 0, 1, 1], [], []>} : vector<8x128xbf16>, vector<128x128xbf16>, vector<8x128xf32> -> vector<8x128xf32>
    %c0_64 = arith.constant 0 : index
    %c0_65 = arith.constant 0 : index
    %129 = vector.load %arg19[%c0_64, %c0_65] : memref<1x128xf32, #tpu.memory_space<vmem>>, vector<1x128xf32>
    %130 = vector.broadcast %129 : vector<1x128xf32> to vector<8x128xf32>
    %131 = arith.addf %128, %130 : vector<8x128xf32>
    %cst_66 = arith.constant 0.000000e+00 : f32
    %132 = vector.broadcast %cst_66 : f32 to vector<8x128xf32>
    %133 = arith.maximumf %131, %132 : vector<8x128xf32>
    %c0_67 = arith.constant 0 : index
    %c0_68 = arith.constant 0 : index
    %134 = vector.load %arg20[%c0_67, %c0_68] : memref<1x128xbf16, #tpu.memory_space<vmem>>, vector<1x128xbf16>
    %135 = arith.truncf %133 : vector<8x128xf32> to vector<8x128xbf16>
    "tpu.trace_start"() <{level = 10 : i32, message = "of,bf->ob"}> : () -> ()
    %cst_69 = arith.constant dense<0.000000e+00> : vector<1x8xf32>
    %136 = tpu.matmul %134, %135, %cst_69 {dimension_numbers = #tpu.dot_dimension_numbers<[1], [1], [0], [0], [0, 0, 1, 0], [], []>} : vector<1x128xbf16>, vector<8x128xbf16>, vector<1x8xf32> -> vector<1x8xf32>
    "tpu.trace_stop"() : () -> ()
    %c0_70 = arith.constant 0 : index
    %c0_71 = arith.constant 0 : index
    %137 = vector.load %arg21[%c0_70, %c0_71] : memref<1x1xf32, #tpu.memory_space<vmem>>, vector<1x1xf32>
    %138 = vector.broadcast %137 : vector<1x1xf32> to vector<1x8xf32>
    %139 = arith.addf %136, %138 : vector<1x8xf32>
    %cst_72 = arith.constant -6.000000e+01 : f32
    %140 = vector.broadcast %cst_72 : f32 to vector<1x8xf32>
    %141 = arith.maximumf %139, %140 : vector<1x8xf32>
    %cst_73 = arith.constant 0.000000e+00 : f32
    %142 = vector.broadcast %cst_73 : f32 to vector<1x8xf32>
    %143 = arith.subf %142, %141 : vector<1x8xf32>
    %144 = math.exp %143 : vector<1x8xf32>
    %cst_74 = arith.constant 1.000000e+00 : f32
    %145 = vector.broadcast %cst_74 : f32 to vector<1x8xf32>
    %146 = arith.addf %145, %144 : vector<1x8xf32>
    %147 = tpu.reciprocal %146 {approx = true} : vector<1x8xf32> -> vector<1x8xf32>
    %148 = vector.shape_cast %147 : vector<1x8xf32> to vector<1x1x8xf32>
    %c0_75 = arith.constant 0 : index
    %c0_76 = arith.constant 0 : index
    %c0_77 = arith.constant 0 : index
    %149 = vector.load %arg22[%c0_75, %c0_76, %c0_77] : memref<1x1x8xf32, #tpu.memory_space<vmem>>, vector<1x1x8xf32>
    tpu.vector_store %arg22[%c0_75, %c0_76, %c0_77], %148 {strides = array<i32>} : memref<1x1x8xf32, #tpu.memory_space<vmem>>, vector<1x1x8xf32>,
    return
  }
  func.func @transform_0(%arg0: i32) -> (i32, i32) {
    %c0_i32 = arith.constant 0 : i32
    %c0_i32_0 = arith.constant 0 : i32
    return %arg0, %c0_i32 : i32, i32
  }
  func.func @transform_1(%arg0: i32) -> (i32, i32) {
    %c0_i32 = arith.constant 0 : i32
    %c0_i32_0 = arith.constant 0 : i32
    return %arg0, %c0_i32 : i32, i32
  }
  func.func @transform_2(%arg0: i32) -> (i32, i32) {
    %c0_i32 = arith.constant 0 : i32
    %c0_i32_0 = arith.constant 0 : i32
    %c0_i32_1 = arith.constant 0 : i32
    return %c0_i32, %c0_i32_0 : i32, i32
  }
  func.func @transform_3(%arg0: i32) -> (i32, i32) {
    %c0_i32 = arith.constant 0 : i32
    %c0_i32_0 = arith.constant 0 : i32
    %c0_i32_1 = arith.constant 0 : i32
    return %c0_i32, %c0_i32_0 : i32, i32
  }
  func.func @transform_4(%arg0: i32) -> (i32, i32) {
    %c0_i32 = arith.constant 0 : i32
    %c0_i32_0 = arith.constant 0 : i32
    %c0_i32_1 = arith.constant 0 : i32
    return %c0_i32, %c0_i32_0 : i32, i32
  }
  func.func @transform_5(%arg0: i32) -> (i32, i32) {
    %c0_i32 = arith.constant 0 : i32
    %c0_i32_0 = arith.constant 0 : i32
    %c0_i32_1 = arith.constant 0 : i32
    return %c0_i32, %c0_i32_0 : i32, i32
  }
  func.func @transform_6(%arg0: i32) -> (i32, i32) {
    %c0_i32 = arith.constant 0 : i32
    %c0_i32_0 = arith.constant 0 : i32
    %c0_i32_1 = arith.constant 0 : i32
    return %c0_i32, %c0_i32_0 : i32, i32
  }
  func.func @transform_7(%arg0: i32) -> (i32, i32) {
    %c0_i32 = arith.constant 0 : i32
    %c0_i32_0 = arith.constant 0 : i32
    %c0_i32_1 = arith.constant 0 : i32
    return %c0_i32, %c0_i32_0 : i32, i32
  }
  func.func @transform_8(%arg0: i32) -> (i32, i32) {
    %c0_i32 = arith.constant 0 : i32
    %c0_i32_0 = arith.constant 0 : i32
    %c0_i32_1 = arith.constant 0 : i32
    return %c0_i32, %c0_i32_0 : i32, i32
  }
  func.func @transform_9(%arg0: i32) -> (i32, i32) {
    %c0_i32 = arith.constant 0 : i32
    %c0_i32_0 = arith.constant 0 : i32
    %c0_i32_1 = arith.constant 0 : i32
    return %c0_i32, %c0_i32_0 : i32, i32
  }
  func.func @transform_10(%arg0: i32) -> (i32, i32) {
    %c0_i32 = arith.constant 0 : i32
    %c0_i32_0 = arith.constant 0 : i32
    %c0_i32_1 = arith.constant 0 : i32
    return %c0_i32, %c0_i32_0 : i32, i32
  }
  func.func @transform_11(%arg0: i32) -> (i32, i32) {
    %c0_i32 = arith.constant 0 : i32
    %c0_i32_0 = arith.constant 0 : i32
    %c0_i32_1 = arith.constant 0 : i32
    return %c0_i32, %c0_i32_0 : i32, i32
  }
  func.func @transform_12(%arg0: i32) -> (i32, i32) {
    %c0_i32 = arith.constant 0 : i32
    %c0_i32_0 = arith.constant 0 : i32
    %c0_i32_1 = arith.constant 0 : i32
    return %c0_i32, %c0_i32_0 : i32, i32
  }
  func.func @transform_13(%arg0: i32) -> (i32, i32) {
    %c0_i32 = arith.constant 0 : i32
    %c0_i32_0 = arith.constant 0 : i32
    %c0_i32_1 = arith.constant 0 : i32
    return %c0_i32, %c0_i32_0 : i32, i32
  }
  func.func @transform_14(%arg0: i32) -> (i32, i32) {
    %c0_i32 = arith.constant 0 : i32
    %c0_i32_0 = arith.constant 0 : i32
    %c0_i32_1 = arith.constant 0 : i32
    return %c0_i32, %c0_i32_0 : i32, i32
  }
  func.func @transform_15(%arg0: i32) -> (i32, i32) {
    %c0_i32 = arith.constant 0 : i32
    %c0_i32_0 = arith.constant 0 : i32
    %c0_i32_1 = arith.constant 0 : i32
    return %c0_i32, %c0_i32_0 : i32, i32
  }
  func.func @transform_16(%arg0: i32) -> (i32, i32) {
    %c0_i32 = arith.constant 0 : i32
    %c0_i32_0 = arith.constant 0 : i32
    %c0_i32_1 = arith.constant 0 : i32
    return %c0_i32, %c0_i32_0 : i32, i32
  }
  func.func @transform_17(%arg0: i32) -> (i32, i32) {
    %c0_i32 = arith.constant 0 : i32
    %c0_i32_0 = arith.constant 0 : i32
    %c0_i32_1 = arith.constant 0 : i32
    return %c0_i32, %c0_i32_0 : i32, i32
  }
  func.func @transform_18(%arg0: i32) -> (i32, i32) {
    %c0_i32 = arith.constant 0 : i32
    %c0_i32_0 = arith.constant 0 : i32
    %c0_i32_1 = arith.constant 0 : i32
    return %c0_i32, %c0_i32_0 : i32, i32
  }
  func.func @transform_19(%arg0: i32) -> (i32, i32) {
    %c0_i32 = arith.constant 0 : i32
    %c0_i32_0 = arith.constant 0 : i32
    %c0_i32_1 = arith.constant 0 : i32
    return %c0_i32, %c0_i32_0 : i32, i32
  }
  func.func @transform_20(%arg0: i32) -> (i32, i32) {
    %c0_i32 = arith.constant 0 : i32
    %c0_i32_0 = arith.constant 0 : i32
    %c0_i32_1 = arith.constant 0 : i32
    return %c0_i32, %c0_i32_0 : i32, i32
  }
  func.func @transform_21(%arg0: i32) -> (i32, i32, i32) {
    %c0_i32 = arith.constant 0 : i32
    %c0_i32_0 = arith.constant 0 : i32
    %c0_i32_1 = arith.constant 0 : i32
    return %arg0, %c0_i32, %c0_i32_0 : i32, i32, i32
  }
}

</mosaic_0001>

<llo_original>
// kernel: forward.1
$region0: #{forward.1}
  #allocation0 [shape = 'u32[]', space=smem, size = 0x4, offset = 0x4, fixed_abs, tag = 'smem constant byte address 0x4 - core index']
  #allocation1 [shape = 'u32[72,128]{1,0:T(1,128)}', space=vmem, size = 0x9000, scoped, tag = 'internal scratch']
  #allocation2 [shape = 'f32[1,1]{1,0:T(1,128)S(1)}', space=vmem, size = 0x200, scoped, tag = 'scoped memory for forward.1']
  %s0 = inlined_call_operand.vmem [shape: s32[8,8], index: 0, kind: input, shape index: {}]
  %s1 = inlined_call_operand.vmem [shape: s32[8,8], index: 1, kind: input, shape index: {}]
  %s2 = inlined_call_operand.vmem [shape: f32[42,32], index: 2, kind: input, shape index: {}]
  %s3 = inlined_call_operand.vmem [shape: bf16[32,96], index: 3, kind: input, shape index: {}]
  %s4 = inlined_call_operand.hbm [shape: f32[1,96], index: 4, kind: input, shape index: {}]
  %s5 = inlined_call_operand.vmem [shape: bf16[32,32], index: 5, kind: input, shape index: {}]
  %s6 = inlined_call_operand.hbm [shape: f32[1,32], index: 6, kind: input, shape index: {}]
  %s7 = inlined_call_operand.vmem [shape: bf16[32,32], index: 7, kind: input, shape index: {}]
  %s8 = inlined_call_operand.hbm [shape: f32[1,32], index: 8, kind: input, shape index: {}]
  %s9 = inlined_call_operand.hbm [shape: bf16[32,33], index: 9, kind: input, shape index: {}]
  %s10 = inlined_call_operand.hbm [shape: f32[1,33], index: 10, kind: input, shape index: {}]
  %s11 = inlined_call_operand.hbm [shape: bf16[32,32], index: 11, kind: input, shape index: {}]
  %s12 = inlined_call_operand.hbm [shape: f32[1,32], index: 12, kind: input, shape index: {}]
  %s13 = inlined_call_operand.hbm [shape: bf16[32,64], index: 13, kind: input, shape index: {}]
  %s14 = inlined_call_operand.hbm [shape: f32[1,64], index: 14, kind: input, shape index: {}]
  %s15 = inlined_call_operand.hbm [shape: bf16[32,128], index: 15, kind: input, shape index: {}]
  %s16 = inlined_call_operand.hbm [shape: f32[1,128], index: 16, kind: input, shape index: {}]
  %s17 = inlined_call_operand.vmem [shape: bf16[128,128], index: 17, kind: input, shape index: {}]
  %s18 = inlined_call_operand.hbm [shape: f32[1,128], index: 18, kind: input, shape index: {}]
  %s19 = inlined_call_operand.hbm [shape: bf16[1,128], index: 19, kind: input, shape index: {}]
  %s20 = inlined_call_operand.<no memory space> [shape: f32[1,1], index: 20, kind: input, shape index: {}]
  %s21 = inlined_call_operand.vmem [shape: f32[1,1,8], index: 21, kind: output, shape index: {}]
  %s22 = sld [smem:[#allocation0]]
  $region146: #{forward.1} parent=0
    _
  %s24 = ssub.s32 1, %s22
  %s25 = scalar_select 0, %s24, %s22
  %v26 = vstv %s20
  %27 = vst [vmem:[#allocation2] sm:$0x1] %v26
  $region1: #{forward.1} parent=0
    #allocation3 [shape = 'u8[512]{0}', space=vmem, size = 0x400, scoped, tag = 'input window, operand 4, single buffered']
    #allocation4 [shape = 's32[1]{0}', space=sflag, size = 0x4, scoped, tag = 'scoped memory for forward.1']
    #allocation5 [shape = 'u8[512]{0}', space=vmem, size = 0x400, scoped, tag = 'input window, operand 6, single buffered']
    #allocation6 [shape = 's32[1]{0}', space=sflag, size = 0x4, scoped, tag = 'scoped memory for forward.1']
    #allocation7 [shape = 'u8[512]{0}', space=vmem, size = 0x400, scoped, tag = 'input window, operand 8, single buffered']
    #allocation8 [shape = 'u8[8192]{0}', space=vmem, size = 0x2000, scoped, tag = 'input window, operand 9, single buffered']
    #allocation9 [shape = 's32[1]{0}', space=sflag, size = 0x4, scoped, tag = 'scoped memory for forward.1']
    #allocation10 [shape = 'u8[512]{0}', space=vmem, size = 0x400, scoped, tag = 'input window, operand 10, single buffered']
    #allocation11 [shape = 'u8[8192]{0}', space=vmem, size = 0x2000, scoped, tag = 'input window, operand 11, single buffered']
    #allocation12 [shape = 's32[1]{0}', space=sflag, size = 0x4, scoped, tag = 'scoped memory for forward.1']
    #allocation13 [shape = 'u8[512]{0}', space=vmem, size = 0x400, scoped, tag = 'input window, operand 12, single buffered']
    #allocation14 [shape = 'u8[8192]{0}', space=vmem, size = 0x2000, scoped, tag = 'input window, operand 13, single buffered']
    #allocation15 [shape = 's32[1]{0}', space=sflag, size = 0x4, scoped, tag = 'scoped memory for forward.1']
    #allocation16 [shape = 'u8[512]{0}', space=vmem, size = 0x400, scoped, tag = 'input window, operand 14, single buffered']
    #allocation17 [shape = 'u8[8192]{0}', space=vmem, size = 0x2000, scoped, tag = 'input window, operand 15, single buffered']
    #allocation18 [shape = 's32[1]{0}', space=sflag, size = 0x4, scoped, tag = 'scoped memory for forward.1']
    #allocation19 [shape = 'u8[512]{0}', space=vmem, size = 0x400, scoped, tag = 'input window, operand 16, single buffered']
    #allocation20 [shape = 'u8[512]{0}', space=vmem, size = 0x400, scoped, tag = 'input window, operand 18, single buffered']
    #allocation21 [shape = 's32[1]{0}', space=sflag, size = 0x4, scoped, tag = 'scoped memory for forward.1']
    #allocation22 [shape = 'u8[512]{0}', space=vmem, size = 0x400, scoped, tag = 'input window, operand 19, single buffered']
    %28 = vsyncpa [#allocation4], 0
    %29 = vsyncpa [#allocation6], 0
    %30 = vsyncpa [#allocation9], 0
    %31 = vsyncpa [#allocation12], 0
    %32 = vsyncpa [#allocation15], 0
    %33 = vsyncpa [#allocation18], 0
    %34 = vsyncpa [#allocation21], 0
    // Predicated region
    $region2: #{forward.1} parent=1 // pred_check
      _
    $region3: #{forward.1} parent=1 // pred_check_branch
      %36 = sbr.rel (0) target = $region5
    $region4: #{forward.1} parent=1 // pred_region
      _
    $region5: #{forward.1} parent=1 // pred_fallthru
      _
    // Predicated region
    $region6: #{forward.1} parent=1 // pred_check
      _
    $region7: #{forward.1} parent=1 // pred_check_branch
      %38 = sbr.rel (0) target = $region9
    $region8: #{forward.1} parent=1 // pred_region
      _
    $region9: #{forward.1} parent=1 // pred_fallthru
      _
    // Predicated region
    $region10: #{forward.1} parent=1 // pred_check
      _
    $region11: #{forward.1} parent=1 // pred_check_branch
      %40 = sbr.rel (0) target = $region13
    $region12: #{forward.1} parent=1 // pred_region
      _
    $region13: #{forward.1} parent=1 // pred_fallthru
      _
    // Predicated region
    $region14: #{forward.1} parent=1 // pred_check
      _
    $region15: #{forward.1} parent=1 // pred_check_branch
      %42 = sbr.rel (0) target = $region17
    $region16: #{forward.1} parent=1 // pred_region
      _
    $region17: #{forward.1} parent=1 // pred_fallthru
      _
    // Predicated region
    $region18: #{forward.1} parent=1 // pred_check
      _
    $region19: #{forward.1} parent=1 // pred_check_branch
      %44 = sbr.rel (0) target = $region21
    $region20: #{forward.1} parent=1 // pred_region
      %46 = vsyncadd [#allocation4], 0
      %s48 = sshll.u32 %s4, 4
      %s49 = int_to_ptr.hbm [resolvable:$true] %s48
      %s50 = sshll.u32 [#allocation3], 4
      %s51 = int_to_ptr.vmem [resolvable:$true] %s50
      %53 = dma.hbm_to_vmem [thread:$0]  %s49, 16, %s51, [#allocation4]
    $region21: #{forward.1} parent=1 // pred_fallthru
      _
    // Predicated region
    $region22: #{forward.1} parent=1 // pred_check
      _
    $region23: #{forward.1} parent=1 // pred_check_branch
      %55 = sbr.rel (0) target = $region25
    $region24: #{forward.1} parent=1 // pred_region
      _
    $region25: #{forward.1} parent=1 // pred_fallthru
      _
    // Predicated region
    $region26: #{forward.1} parent=1 // pred_check
      _
    $region27: #{forward.1} parent=1 // pred_check_branch
      %57 = sbr.rel (0) target = $region29
    $region28: #{forward.1} parent=1 // pred_region
      %59 = vsyncadd [#allocation6], 0
      %s61 = sshll.u32 %s6, 4
      %s62 = int_to_ptr.hbm [resolvable:$true] %s61
      %s63 = sshll.u32 [#allocation5], 4
      %s64 = int_to_ptr.vmem [resolvable:$true] %s63
      %66 = dma.hbm_to_vmem [thread:$0]  %s62, 16, %s64, [#allocation6]
    $region29: #{forward.1} parent=1 // pred_fallthru
      _
    // Predicated region
    $region30: #{forward.1} parent=1 // pred_check
      _
    $region31: #{forward.1} parent=1 // pred_check_branch
      %68 = sbr.rel (0) target = $region33
    $region32: #{forward.1} parent=1 // pred_region
      _
    $region33: #{forward.1} parent=1 // pred_fallthru
      _
    // Predicated region
    $region34: #{forward.1} parent=1 // pred_check
      _
    $region35: #{forward.1} parent=1 // pred_check_branch
      %70 = sbr.rel (0) target = $region37
    $region36: #{forward.1} parent=1 // pred_region
      %72 = vsyncadd [#allocation6], 0
      %s74 = sshll.u32 %s8, 4
      %s75 = int_to_ptr.hbm [resolvable:$true] %s74
      %s76 = sshll.u32 [#allocation7], 4
      %s77 = int_to_ptr.vmem [resolvable:$true] %s76
      %79 = dma.hbm_to_vmem [thread:$0]  %s75, 16, %s77, [#allocation6]
    $region37: #{forward.1} parent=1 // pred_fallthru
      _
    // Predicated region
    $region38: #{forward.1} parent=1 // pred_check
      _
    $region39: #{forward.1} parent=1 // pred_check_branch
      %81 = sbr.rel (0) target = $region41
    $region40: #{forward.1} parent=1 // pred_region
      %83 = vsyncadd [#allocation9], 0
      %s84 = sshll.u32 %s9, 4
      %s85 = int_to_ptr.hbm [resolvable:$true] %s84
      %s86 = sshll.u32 [#allocation8], 4
      %s87 = int_to_ptr.vmem [resolvable:$true] %s86
      %92 = dma.hbm_to_vmem [thread:$0]  %s85, 256, %s87, [#allocation9], 64, 64, 4
    $region41: #{forward.1} parent=1 // pred_fallthru
      _
    // Predicated region
    $region42: #{forward.1} parent=1 // pred_check
      _
    $region43: #{forward.1} parent=1 // pred_check_branch
      %94 = sbr.rel (0) target = $region45
    $region44: #{forward.1} parent=1 // pred_region
      %96 = vsyncadd [#allocation9], 0
      %s98 = sshll.u32 %s10, 4
      %s99 = int_to_ptr.hbm [resolvable:$true] %s98
      %s100 = sshll.u32 [#allocation10], 4
      %s101 = int_to_ptr.vmem [resolvable:$true] %s100
      %103 = dma.hbm_to_vmem [thread:$0]  %s99, 16, %s101, [#allocation9]
    $region45: #{forward.1} parent=1 // pred_fallthru
      _
    // Predicated region
    $region46: #{forward.1} parent=1 // pred_check
      _
    $region47: #{forward.1} parent=1 // pred_check_branch
      %105 = sbr.rel (0) target = $region49
    $region48: #{forward.1} parent=1 // pred_region
      %107 = vsyncadd [#allocation12], 0
      %s108 = sshll.u32 %s11, 4
      %s109 = int_to_ptr.hbm [resolvable:$true] %s108
      %s110 = sshll.u32 [#allocation11], 4
      %s111 = int_to_ptr.vmem [resolvable:$true] %s110
      %116 = dma.hbm_to_vmem [thread:$0]  %s109, 256, %s111, [#allocation12], 64, 64, 4
    $region49: #{forward.1} parent=1 // pred_fallthru
      _
    // Predicated region
    $region50: #{forward.1} parent=1 // pred_check
      _
    $region51: #{forward.1} parent=1 // pred_check_branch
      %118 = sbr.rel (0) target = $region53
    $region52: #{forward.1} parent=1 // pred_region
      %120 = vsyncadd [#allocation12], 0
      %s122 = sshll.u32 %s12, 4
      %s123 = int_to_ptr.hbm [resolvable:$true] %s122
      %s124 = sshll.u32 [#allocation13], 4
      %s125 = int_to_ptr.vmem [resolvable:$true] %s124
      %127 = dma.hbm_to_vmem [thread:$0]  %s123, 16, %s125, [#allocation12]
    $region53: #{forward.1} parent=1 // pred_fallthru
      _
    // Predicated region
    $region54: #{forward.1} parent=1 // pred_check
      _
    $region55: #{forward.1} parent=1 // pred_check_branch
      %129 = sbr.rel (0) target = $region57
    $region56: #{forward.1} parent=1 // pred_region
      %131 = vsyncadd [#allocation15], 0
      %s132 = sshll.u32 %s13, 4
      %s133 = int_to_ptr.hbm [resolvable:$true] %s132
      %s134 = sshll.u32 [#allocation14], 4
      %s135 = int_to_ptr.vmem [resolvable:$true] %s134
      %140 = dma.hbm_to_vmem [thread:$0]  %s133, 256, %s135, [#allocation15], 64, 64, 4
    $region57: #{forward.1} parent=1 // pred_fallthru
      _
    // Predicated region
    $region58: #{forward.1} parent=1 // pred_check
      _
    $region59: #{forward.1} parent=1 // pred_check_branch
      %142 = sbr.rel (0) target = $region61
    $region60: #{forward.1} parent=1 // pred_region
      %144 = vsyncadd [#allocation15], 0
      %s146 = sshll.u32 %s14, 4
      %s147 = int_to_ptr.hbm [resolvable:$true] %s146
      %s148 = sshll.u32 [#allocation16], 4
      %s149 = int_to_ptr.vmem [resolvable:$true] %s148
      %151 = dma.hbm_to_vmem [thread:$0]  %s147, 16, %s149, [#allocation15]
    $region61: #{forward.1} parent=1 // pred_fallthru
      _
    // Predicated region
    $region62: #{forward.1} parent=1 // pred_check
      _
    $region63: #{forward.1} parent=1 // pred_check_branch
      %153 = sbr.rel (0) target = $region65
    $region64: #{forward.1} parent=1 // pred_region
      %155 = vsyncadd [#allocation18], 0
      %s156 = sshll.u32 %s15, 4
      %s157 = int_to_ptr.hbm [resolvable:$true] %s156
      %s158 = sshll.u32 [#allocation17], 4
      %s159 = int_to_ptr.vmem [resolvable:$true] %s158
      %164 = dma.hbm_to_vmem [thread:$0]  %s157, 256, %s159, [#allocation18], 64, 64, 4
    $region65: #{forward.1} parent=1 // pred_fallthru
      _
    // Predicated region
    $region66: #{forward.1} parent=1 // pred_check
      _
    $region67: #{forward.1} parent=1 // pred_check_branch
      %166 = sbr.rel (0) target = $region69
    $region68: #{forward.1} parent=1 // pred_region
      %168 = vsyncadd [#allocation18], 0
      %s170 = sshll.u32 %s16, 4
      %s171 = int_to_ptr.hbm [resolvable:$true] %s170
      %s172 = sshll.u32 [#allocation19], 4
      %s173 = int_to_ptr.vmem [resolvable:$true] %s172
      %175 = dma.hbm_to_vmem [thread:$0]  %s171, 16, %s173, [#allocation18]
    $region69: #{forward.1} parent=1 // pred_fallthru
      _
    // Predicated region
    $region70: #{forward.1} parent=1 // pred_check
      _
    $region71: #{forward.1} parent=1 // pred_check_branch
      %177 = sbr.rel (0) target = $region73
    $region72: #{forward.1} parent=1 // pred_region
      _
    $region73: #{forward.1} parent=1 // pred_fallthru
      _
    // Predicated region
    $region74: #{forward.1} parent=1 // pred_check
      _
    $region75: #{forward.1} parent=1 // pred_check_branch
      %179 = sbr.rel (0) target = $region77
    $region76: #{forward.1} parent=1 // pred_region
      %181 = vsyncadd [#allocation21], 0
      %s183 = sshll.u32 %s18, 4
      %s184 = int_to_ptr.hbm [resolvable:$true] %s183
      %s185 = sshll.u32 [#allocation20], 4
      %s186 = int_to_ptr.vmem [resolvable:$true] %s185
      %188 = dma.hbm_to_vmem [thread:$0]  %s184, 16, %s186, [#allocation21]
    $region77: #{forward.1} parent=1 // pred_fallthru
      _
    // Predicated region
    $region78: #{forward.1} parent=1 // pred_check
      _
    $region79: #{forward.1} parent=1 // pred_check_branch
      %190 = sbr.rel (0) target = $region81
    $region80: #{forward.1} parent=1 // pred_region
      %192 = vsyncadd [#allocation21], 0
      %s194 = sshll.u32 %s19, 4
      %s195 = int_to_ptr.hbm [resolvable:$true] %s194
      %s196 = sshll.u32 [#allocation22], 4
      %s197 = int_to_ptr.vmem [resolvable:$true] %s196
      %199 = dma.hbm_to_vmem [thread:$0]  %s195, 16, %s197, [#allocation21]
    $region81: #{forward.1} parent=1 // pred_fallthru
      _
    // Predicated region
    $region82: #{forward.1} parent=1 // pred_check
      _
    $region83: #{forward.1} parent=1 // pred_check_branch
      %201 = sbr.rel (0) target = $region85
    $region84: #{forward.1} parent=1 // pred_region
      _
    $region85: #{forward.1} parent=1 // pred_fallthru
      _
    // Predicated region
    $region86: #{forward.1} parent=1 // pred_check
      _
    $region87: #{forward.1} parent=1 // pred_check_branch
      %203 = sbr.rel (0) target = $region89
    $region88: #{forward.1} parent=1 // pred_region
      %205 = dma.done [#allocation4], 16
    $region89: #{forward.1} parent=1 // pred_fallthru
      _
    // Predicated region
    $region90: #{forward.1} parent=1 // pred_check
      _
    $region91: #{forward.1} parent=1 // pred_check_branch
      %207 = sbr.rel (0) target = $region93
    $region92: #{forward.1} parent=1 // pred_region
      %209 = dma.done [#allocation6], 16
    $region93: #{forward.1} parent=1 // pred_fallthru
      _
    // Predicated region
    $region94: #{forward.1} parent=1 // pred_check
      _
    $region95: #{forward.1} parent=1 // pred_check_branch
      %211 = sbr.rel (0) target = $region97
    $region96: #{forward.1} parent=1 // pred_region
      %213 = dma.done [#allocation6], 16
    $region97: #{forward.1} parent=1 // pred_fallthru
      _
    // Predicated region
    $region98: #{forward.1} parent=1 // pred_check
      _
    $region99: #{forward.1} parent=1 // pred_check_branch
      %215 = sbr.rel (0) target = $region101
    $region100: #{forward.1} parent=1 // pred_region
      %217 = dma.done [#allocation9], 256
    $region101: #{forward.1} parent=1 // pred_fallthru
      _
    // Predicated region
    $region102: #{forward.1} parent=1 // pred_check
      _
    $region103: #{forward.1} parent=1 // pred_check_branch
      %219 = sbr.rel (0) target = $region105
    $region104: #{forward.1} parent=1 // pred_region
      %221 = dma.done [#allocation9], 16
    $region105: #{forward.1} parent=1 // pred_fallthru
      _
    // Predicated region
    $region106: #{forward.1} parent=1 // pred_check
      _
    $region107: #{forward.1} parent=1 // pred_check_branch
      %223 = sbr.rel (0) target = $region109
    $region108: #{forward.1} parent=1 // pred_region
      %225 = dma.done [#allocation12], 256
    $region109: #{forward.1} parent=1 // pred_fallthru
      _
    // Predicated region
    $region110: #{forward.1} parent=1 // pred_check
      _
    $region111: #{forward.1} parent=1 // pred_check_branch
      %227 = sbr.rel (0) target = $region113
    $region112: #{forward.1} parent=1 // pred_region
      %229 = dma.done [#allocation12], 16
    $region113: #{forward.1} parent=1 // pred_fallthru
      _
    // Predicated region
    $region114: #{forward.1} parent=1 // pred_check
      _
    $region115: #{forward.1} parent=1 // pred_check_branch
      %231 = sbr.rel (0) target = $region117
    $region116: #{forward.1} parent=1 // pred_region
      %233 = dma.done [#allocation15], 256
    $region117: #{forward.1} parent=1 // pred_fallthru
      _
    // Predicated region
    $region118: #{forward.1} parent=1 // pred_check
      _
    $region119: #{forward.1} parent=1 // pred_check_branch
      %235 = sbr.rel (0) target = $region121
    $region120: #{forward.1} parent=1 // pred_region
      %237 = dma.done [#allocation15], 16
    $region121: #{forward.1} parent=1 // pred_fallthru
      _
    // Predicated region
    $region122: #{forward.1} parent=1 // pred_check
      _
    $region123: #{forward.1} parent=1 // pred_check_branch
      %239 = sbr.rel (0) target = $region125
    $region124: #{forward.1} parent=1 // pred_region
      %241 = dma.done [#allocation18], 256
    $region125: #{forward.1} parent=1 // pred_fallthru
      _
    // Predicated region
    $region126: #{forward.1} parent=1 // pred_check
      _
    $region127: #{forward.1} parent=1 // pred_check_branch
      %243 = sbr.rel (0) target = $region129
    $region128: #{forward.1} parent=1 // pred_region
      %245 = dma.done [#allocation18], 16
    $region129: #{forward.1} parent=1 // pred_fallthru
      _
    // Predicated region
    $region130: #{forward.1} parent=1 // pred_check
      _
    $region131: #{forward.1} parent=1 // pred_check_branch
      %247 = sbr.rel (0) target = $region133
    $region132: #{forward.1} parent=1 // pred_region
      %249 = dma.done [#allocation21], 16
    $region133: #{forward.1} parent=1 // pred_fallthru
      _
    // Predicated region
    $region134: #{forward.1} parent=1 // pred_check
      _
    $region135: #{forward.1} parent=1 // pred_check_branch
      %251 = sbr.rel (0) target = $region137
    $region136: #{forward.1} parent=1 // pred_region
      %253 = dma.done [#allocation21], 16
    $region137: #{forward.1} parent=1 // pred_fallthru
      _
    %v255 = vlaneseq
    %v256 = vand.u32 %v255, 127
    %v257 = vld [vmem:[%s0] sm:$0xff]
    %v258 = vperm.slane %v257, 0
    %v259 = vlaneseq
    %v260 = vshrl.u32 %v259, 7
    %262 = vset.pattern.permute.xlu0 %v260
    %263 = vperm.xlu0 %262, %v258
    %v264 = vpop.permute.xlu0 %263
    %v265 = vperm.slane %v257, 1
    %v266 = vlaneseq
    %v267 = vshrl.u32 %v266, 7
    %269 = vset.pattern.permute.xlu0 %v267
    %270 = vperm.xlu0 %269, %v265
    %v271 = vpop.permute.xlu0 %270
    %v272 = vperm.slane %v257, 2
    %v273 = vlaneseq
    %v274 = vshrl.u32 %v273, 7
    %276 = vset.pattern.permute.xlu0 %v274
    %277 = vperm.xlu0 %276, %v272
    %v278 = vpop.permute.xlu0 %277
    %v279 = vperm.slane %v257, 3
    %v280 = vlaneseq
    %v281 = vshrl.u32 %v280, 7
    %283 = vset.pattern.permute.xlu0 %v281
    %284 = vperm.xlu0 %283, %v279
    %v285 = vpop.permute.xlu0 %284
    %v286 = vperm.slane %v257, 4
    %v287 = vlaneseq
    %v288 = vshrl.u32 %v287, 7
    %290 = vset.pattern.permute.xlu0 %v288
    %291 = vperm.xlu0 %290, %v286
    %v292 = vpop.permute.xlu0 %291
    %v293 = vperm.slane %v257, 5
    %v294 = vlaneseq
    %v295 = vshrl.u32 %v294, 7
    %297 = vset.pattern.permute.xlu0 %v295
    %298 = vperm.xlu0 %297, %v293
    %v299 = vpop.permute.xlu0 %298
    %v300 = vperm.slane %v257, 6
    %v301 = vlaneseq
    %v302 = vshrl.u32 %v301, 7
    %304 = vset.pattern.permute.xlu0 %v302
    %305 = vperm.xlu0 %304, %v300
    %v306 = vpop.permute.xlu0 %305
    %v307 = vperm.slane %v257, 7
    %v308 = vlaneseq
    %v309 = vshrl.u32 %v308, 7
    %311 = vset.pattern.permute.xlu0 %v309
    %312 = vperm.xlu0 %311, %v307
    %v313 = vpop.permute.xlu0 %312
    %vm314 = vcmp.eq.s32.totalorder %v256, %v264
    %vm315 = vcmp.eq.s32.totalorder %v256, %v271
    %vm316 = vcmp.eq.s32.totalorder %v256, %v278
    %vm317 = vcmp.eq.s32.totalorder %v256, %v285
    %vm318 = vcmp.eq.s32.totalorder %v256, %v292
    %vm319 = vcmp.eq.s32.totalorder %v256, %v299
    %vm320 = vcmp.eq.s32.totalorder %v256, %v306
    %vm321 = vcmp.eq.s32.totalorder %v256, %v313
    %v322 = vld [vmem:[%s1] sm:$0xff]
    %v323 = vperm.slane %v322, 0
    %v324 = vlaneseq
    %v325 = vshrl.u32 %v324, 7
    %327 = vset.pattern.permute.xlu0 %v325
    %328 = vperm.xlu0 %327, %v323
    %v329 = vpop.permute.xlu0 %328
    %v330 = vperm.slane %v322, 1
    %v331 = vlaneseq
    %v332 = vshrl.u32 %v331, 7
    %334 = vset.pattern.permute.xlu0 %v332
    %335 = vperm.xlu0 %334, %v330
    %v336 = vpop.permute.xlu0 %335
    %v337 = vperm.slane %v322, 2
    %v338 = vlaneseq
    %v339 = vshrl.u32 %v338, 7
    %341 = vset.pattern.permute.xlu0 %v339
    %342 = vperm.xlu0 %341, %v337
    %v343 = vpop.permute.xlu0 %342
    %v344 = vperm.slane %v322, 3
    %v345 = vlaneseq
    %v346 = vshrl.u32 %v345, 7
    %348 = vset.pattern.permute.xlu0 %v346
    %349 = vperm.xlu0 %348, %v344
    %v350 = vpop.permute.xlu0 %349
    %v351 = vperm.slane %v322, 4
    %v352 = vlaneseq
    %v353 = vshrl.u32 %v352, 7
    %355 = vset.pattern.permute.xlu0 %v353
    %356 = vperm.xlu0 %355, %v351
    %v357 = vpop.permute.xlu0 %356
    %v358 = vperm.slane %v322, 5
    %v359 = vlaneseq
    %v360 = vshrl.u32 %v359, 7
    %362 = vset.pattern.permute.xlu0 %v360
    %363 = vperm.xlu0 %362, %v358
    %v364 = vpop.permute.xlu0 %363
    %v365 = vperm.slane %v322, 6
    %v366 = vlaneseq
    %v367 = vshrl.u32 %v366, 7
    %369 = vset.pattern.permute.xlu0 %v367
    %370 = vperm.xlu0 %369, %v365
    %v371 = vpop.permute.xlu0 %370
    %v372 = vperm.slane %v322, 7
    %v373 = vlaneseq
    %v374 = vshrl.u32 %v373, 7
    %376 = vset.pattern.permute.xlu0 %v374
    %377 = vperm.xlu0 %376, %v372
    %v378 = vpop.permute.xlu0 %377
    %v379 = vadd.s32 %v329, 21
    %v380 = vadd.s32 %v336, 21
    %v381 = vadd.s32 %v343, 21
    %v382 = vadd.s32 %v350, 21
    %v383 = vadd.s32 %v357, 21
    %v384 = vadd.s32 %v364, 21
    %v385 = vadd.s32 %v371, 21
    %v386 = vadd.s32 %v378, 21
    %vm387 = vcmp.eq.s32.totalorder %v256, %v379
    %vm388 = vcmp.eq.s32.totalorder %v256, %v380
    %vm389 = vcmp.eq.s32.totalorder %v256, %v381
    %vm390 = vcmp.eq.s32.totalorder %v256, %v382
    %vm391 = vcmp.eq.s32.totalorder %v256, %v383
    %vm392 = vcmp.eq.s32.totalorder %v256, %v384
    %vm393 = vcmp.eq.s32.totalorder %v256, %v385
    %vm394 = vcmp.eq.s32.totalorder %v256, %v386
    %vm395 = vmor %vm314, %vm387
    %vm396 = vmor %vm315, %vm388
    %vm397 = vmor %vm316, %vm389
    %vm398 = vmor %vm317, %vm390
    %vm399 = vmor %vm318, %vm391
    %vm400 = vmor %vm319, %vm392
    %vm401 = vmor %vm320, %vm393
    %vm402 = vmor %vm321, %vm394
    %v403 = vsel %vm395, 1.0, 0.0
    %v404 = vsel %vm396, 1.0, 0.0
    %v405 = vsel %vm397, 1.0, 0.0
    %v406 = vsel %vm398, 1.0, 0.0
    %v407 = vsel %vm399, 1.0, 0.0
    %v408 = vsel %vm400, 1.0, 0.0
    %v409 = vsel %vm401, 1.0, 0.0
    %v410 = vsel %vm402, 1.0, 0.0
    %v411 = vld [vmem:[%s2] sm:$0xff]
    %v412 = vld [vmem:[%s2 + $0x8] sm:$0xff]
    %v413 = vld [vmem:[%s2 + $0x10] sm:$0xff]
    %v414 = vld [vmem:[%s2 + $0x18] sm:$0xff]
    %v415 = vld [vmem:[%s2 + $0x20] sm:$0xff]
    %v416 = vld [vmem:[%s2 + $0x28] sm:$0x3]
    %vm417 = vcmask 343040
    %v419 = vsel %vm417, %v403, 0
    %v422 = vsel %vm417, %v404, 0
    %v425 = vsel %vm417, %v405, 0
    %v428 = vsel %vm417, %v406, 0
    %v431 = vsel %vm417, %v407, 0
    %v434 = vsel %vm417, %v408, 0
    %v437 = vsel %vm417, %v409, 0
    %v440 = vsel %vm417, %v410, 0
    %vm442 = vcmask 1041408
    %v444 = vsel %vm442, %v416, 0
    %446 = vmatpush.msra.mxu0 0.0
    %447 = vmatpush.msra.mxu0 0.0
    %448 = vmatpush.msra.mxu0 0.0
    %449 = vmatpush.msra.mxu0 0.0
    %450 = vmatpush.msra.mxu0 0.0
    %451 = vmatpush.msra.mxu0 0.0
    %452 = vmatpush.msra.mxu0 0.0
    %453 = vmatpush.msra.mxu0 0.0
    %454 = vmatpush.msra.mxu0 0.0
    %455 = vmatpush.msra.mxu0 0.0
    %456 = vmatpush.msra.mxu0 %v444
    %457 = vmatpush.msra.mxu0 %v415
    %458 = vmatpush.msra.mxu0 %v414
    %459 = vmatpush.msra.mxu0 %v413
    %460 = vmatpush.msra.mxu0 %v412
    %461 = vmatpush.msra.mxu0 %v411
    %462 = vmatmul.f32.gmra.mxu0 %v419
    %v463 = vpop.f32.mrf.mxu0
    %v464 = vadd.f32 0.0, %v463
    %465 = vmatmul.f32.gmra.mxu0 %v422
    %v466 = vpop.f32.mrf.mxu0
    %v467 = vadd.f32 0.0, %v466
    %468 = vmatmul.f32.gmra.mxu0 %v425
    %v469 = vpop.f32.mrf.mxu0
    %v470 = vadd.f32 0.0, %v469
    %471 = vmatmul.f32.gmra.mxu0 %v428
    %v472 = vpop.f32.mrf.mxu0
    %v473 = vadd.f32 0.0, %v472
    %474 = vmatmul.f32.gmra.mxu0 %v431
    %v475 = vpop.f32.mrf.mxu0
    %v476 = vadd.f32 0.0, %v475
    %477 = vmatmul.f32.gmra.mxu0 %v434
    %v478 = vpop.f32.mrf.mxu0
    %v479 = vadd.f32 0.0, %v478
    %480 = vmatmul.f32.gmra.mxu0 %v437
    %v481 = vpop.f32.mrf.mxu0
    %v482 = vadd.f32 0.0, %v481
    %483 = vmatmul.f32.gmra.mxu0 %v440
    %v484 = vpop.f32.mrf.mxu0
    %v485 = vadd.f32 0.0, %v484
    %486 = vdwg.mxu0
    %v487 = vpack.c.bf16 %v467, %v464
    %v488 = vpack.c.bf16 %v473, %v470
    %v489 = vpack.c.bf16 %v479, %v476
    %v490 = vpack.c.bf16 %v485, %v482
    %v491 = vld [vmem:[%s3] sm:$0xf]
    %v492 = vld [vmem:[%s3 + $0x4] sm:$0xf]
    %v493 = vld [vmem:[%s3 + $0x8] sm:$0xf]
    %v494 = vld [vmem:[%s3 + $0xc] sm:$0xf]
    %v495 = vld [vmem:[#allocation3] sm:$0x1]
    %v497 = vperm.slane %v495, 0
    %v503 = vunpack.c.l.b16 %v491
    %v504 = vunpack.c.l.b16 %v492
    %v505 = vunpack.c.l.b16 %v493
    %v506 = vunpack.c.l.b16 %v494
    %v507 = vpack.c.b16 %v504, %v503
    %v508 = vpack.c.b16 %v506, %v505
    %vm511 = vcmask 261120
    %v513 = vsel %vm511, %v487, 0
    %v516 = vsel %vm511, %v488, 0
    %v519 = vsel %vm511, %v489, 0
    %v522 = vsel %vm511, %v490, 0
    %524 = vmatpush.bf16.msra.mxu0 0
    %525 = vmatpush.bf16.msra.mxu0 0
    %526 = vmatpush.bf16.msra.mxu0 0
    %527 = vmatpush.bf16.msra.mxu0 0
    %528 = vmatpush.bf16.msra.mxu0 0
    %529 = vmatpush.bf16.msra.mxu0 0
    %530 = vmatpush.bf16.msra.mxu0 %v508
    %531 = vmatpush.bf16.msra.mxu0 %v507
    %532 = vmatmul.bf16.gmra.mxu0 %v513
    %v533 = vpop.f32.mrf.mxu0
    %v534 = vadd.f32 %v497, %v533
    %v535 = vpop.f32.mrf.mxu0
    %v536 = vadd.f32 %v497, %v535
    %537 = vmatmul.bf16.gmra.mxu0 %v516
    %v538 = vpop.f32.mrf.mxu0
    %v539 = vadd.f32 %v497, %v538
    %v540 = vpop.f32.mrf.mxu0
    %v541 = vadd.f32 %v497, %v540
    %542 = vmatmul.bf16.gmra.mxu0 %v519
    %v543 = vpop.f32.mrf.mxu0
    %v544 = vadd.f32 %v497, %v543
    %v545 = vpop.f32.mrf.mxu0
    %v546 = vadd.f32 %v497, %v545
    %547 = vmatmul.bf16.gmra.mxu0 %v522
    %v548 = vpop.f32.mrf.mxu0
    %v549 = vadd.f32 %v497, %v548
    %v550 = vpop.f32.mrf.mxu0
    %v551 = vadd.f32 %v497, %v550
    %552 = vdwg.mxu0
    %v553 = vpack.c.bf16 %v534, %v534
    %v554 = vpack.c.bf16 %v536, %v536
    %v555 = vpack.c.bf16 %v539, %v539
    %v556 = vpack.c.bf16 %v541, %v541
    %v557 = vpack.c.bf16 %v544, %v544
    %v558 = vpack.c.bf16 %v546, %v546
    %v559 = vpack.c.bf16 %v549, %v549
    %v560 = vpack.c.bf16 %v551, %v551
    %v562 = vunpack.c.l.b16 %v553
    %v563 = vpack.c.b16 %v562, %v562
    %564 = vrot.lane.b32.xlu0 %v563, 96
    %v565 = vpop.permute.xlu0 %564
    %v567 = vsel %vm511, %v553, 0
    %v570 = vsel %vm511, %v565, 0
    %572 = vmatpush.bf16.xpose.msra.mxu0 0
    %573 = vmatpush.bf16.xpose.msra.mxu0 0
    %574 = vmatpush.bf16.xpose.msra.mxu0 0
    %575 = vmatpush.bf16.xpose.msra.mxu0 0
    %576 = vmatpush.bf16.xpose.msra.mxu0 0
    %577 = vmatpush.bf16.xpose.msra.mxu0 0
    %578 = vmatpush.bf16.xpose.msra.mxu0 0
    %579 = vmatpush.bf16.xpose.msra.mxu0 %v570
    %580 = vmatmul.bf16.gmra.mxu0 %v567
    %v581 = vpop.f32.mrf.mxu0
    %v582 = vadd.f32 0.0, %v581
    %v583 = vpop.f32.mrf.mxu0
    %584 = vdwg.mxu0
    %v586 = vunpack.c.l.b16 %v554
    %v587 = vpack.c.b16 %v586, %v586
    %588 = vrot.lane.b32.xlu0 %v587, 96
    %v589 = vpop.permute.xlu0 %588
    %v591 = vsel %vm511, %v554, 0
    %v594 = vsel %vm511, %v589, 0
    %596 = vmatpush.bf16.xpose.msra.mxu0 0
    %597 = vmatpush.bf16.xpose.msra.mxu0 0
    %598 = vmatpush.bf16.xpose.msra.mxu0 0
    %599 = vmatpush.bf16.xpose.msra.mxu0 0
    %600 = vmatpush.bf16.xpose.msra.mxu0 0
    %601 = vmatpush.bf16.xpose.msra.mxu0 0
    %602 = vmatpush.bf16.xpose.msra.mxu0 0
    %603 = vmatpush.bf16.xpose.msra.mxu0 %v594
    %604 = vmatmul.bf16.gmra.mxu0 %v591
    %v605 = vpop.f32.mrf.mxu0
    %v606 = vadd.f32 0.0, %v605
    %v607 = vpop.f32.mrf.mxu0
    %608 = vdwg.mxu0
    %v610 = vunpack.c.l.b16 %v555
    %v611 = vpack.c.b16 %v610, %v610
    %612 = vrot.lane.b32.xlu0 %v611, 96
    %v613 = vpop.permute.xlu0 %612
    %v615 = vsel %vm511, %v555, 0
    %v618 = vsel %vm511, %v613, 0
    %620 = vmatpush.bf16.xpose.msra.mxu0 0
    %621 = vmatpush.bf16.xpose.msra.mxu0 0
    %622 = vmatpush.bf16.xpose.msra.mxu0 0
    %623 = vmatpush.bf16.xpose.msra.mxu0 0
    %624 = vmatpush.bf16.xpose.msra.mxu0 0
    %625 = vmatpush.bf16.xpose.msra.mxu0 0
    %626 = vmatpush.bf16.xpose.msra.mxu0 0
    %627 = vmatpush.bf16.xpose.msra.mxu0 %v618
    %628 = vmatmul.bf16.gmra.mxu0 %v615
    %v629 = vpop.f32.mrf.mxu0
    %v630 = vadd.f32 0.0, %v629
    %v631 = vpop.f32.mrf.mxu0
    %632 = vdwg.mxu0
    %v634 = vunpack.c.l.b16 %v556
    %v635 = vpack.c.b16 %v634, %v634
    %636 = vrot.lane.b32.xlu0 %v635, 96
    %v637 = vpop.permute.xlu0 %636
    %v639 = vsel %vm511, %v556, 0
    %v642 = vsel %vm511, %v637, 0
    %644 = vmatpush.bf16.xpose.msra.mxu0 0
    %645 = vmatpush.bf16.xpose.msra.mxu0 0
    %646 = vmatpush.bf16.xpose.msra.mxu0 0
    %647 = vmatpush.bf16.xpose.msra.mxu0 0
    %648 = vmatpush.bf16.xpose.msra.mxu0 0
    %649 = vmatpush.bf16.xpose.msra.mxu0 0
    %650 = vmatpush.bf16.xpose.msra.mxu0 0
    %651 = vmatpush.bf16.xpose.msra.mxu0 %v642
    %652 = vmatmul.bf16.gmra.mxu0 %v639
    %v653 = vpop.f32.mrf.mxu0
    %v654 = vadd.f32 0.0, %v653
    %v655 = vpop.f32.mrf.mxu0
    %656 = vdwg.mxu0
    %v658 = vunpack.c.l.b16 %v557
    %v659 = vpack.c.b16 %v658, %v658
    %660 = vrot.lane.b32.xlu0 %v659, 96
    %v661 = vpop.permute.xlu0 %660
    %v663 = vsel %vm511, %v557, 0
    %v666 = vsel %vm511, %v661, 0
    %668 = vmatpush.bf16.xpose.msra.mxu0 0
    %669 = vmatpush.bf16.xpose.msra.mxu0 0
    %670 = vmatpush.bf16.xpose.msra.mxu0 0
    %671 = vmatpush.bf16.xpose.msra.mxu0 0
    %672 = vmatpush.bf16.xpose.msra.mxu0 0
    %673 = vmatpush.bf16.xpose.msra.mxu0 0
    %674 = vmatpush.bf16.xpose.msra.mxu0 0
    %675 = vmatpush.bf16.xpose.msra.mxu0 %v666
    %676 = vmatmul.bf16.gmra.mxu0 %v663
    %v677 = vpop.f32.mrf.mxu0
    %v678 = vadd.f32 0.0, %v677
    %v679 = vpop.f32.mrf.mxu0
    %680 = vdwg.mxu0
    %v682 = vunpack.c.l.b16 %v558
    %v683 = vpack.c.b16 %v682, %v682
    %684 = vrot.lane.b32.xlu0 %v683, 96
    %v685 = vpop.permute.xlu0 %684
    %v687 = vsel %vm511, %v558, 0
    %v690 = vsel %vm511, %v685, 0
    %692 = vmatpush.bf16.xpose.msra.mxu0 0
    %693 = vmatpush.bf16.xpose.msra.mxu0 0
    %694 = vmatpush.bf16.xpose.msra.mxu0 0
    %695 = vmatpush.bf16.xpose.msra.mxu0 0
    %696 = vmatpush.bf16.xpose.msra.mxu0 0
    %697 = vmatpush.bf16.xpose.msra.mxu0 0
    %698 = vmatpush.bf16.xpose.msra.mxu0 0
    %699 = vmatpush.bf16.xpose.msra.mxu0 %v690
    %700 = vmatmul.bf16.gmra.mxu0 %v687
    %v701 = vpop.f32.mrf.mxu0
    %v702 = vadd.f32 0.0, %v701
    %v703 = vpop.f32.mrf.mxu0
    %704 = vdwg.mxu0
    %v706 = vunpack.c.l.b16 %v559
    %v707 = vpack.c.b16 %v706, %v706
    %708 = vrot.lane.b32.xlu0 %v707, 96
    %v709 = vpop.permute.xlu0 %708
    %v711 = vsel %vm511, %v559, 0
    %v714 = vsel %vm511, %v709, 0
    %716 = vmatpush.bf16.xpose.msra.mxu0 0
    %717 = vmatpush.bf16.xpose.msra.mxu0 0
    %718 = vmatpush.bf16.xpose.msra.mxu0 0
    %719 = vmatpush.bf16.xpose.msra.mxu0 0
    %720 = vmatpush.bf16.xpose.msra.mxu0 0
    %721 = vmatpush.bf16.xpose.msra.mxu0 0
    %722 = vmatpush.bf16.xpose.msra.mxu0 0
    %723 = vmatpush.bf16.xpose.msra.mxu0 %v714
    %724 = vmatmul.bf16.gmra.mxu0 %v711
    %v725 = vpop.f32.mrf.mxu0
    %v726 = vadd.f32 0.0, %v725
    %v727 = vpop.f32.mrf.mxu0
    %728 = vdwg.mxu0
    %v730 = vunpack.c.l.b16 %v560
    %v731 = vpack.c.b16 %v730, %v730
    %732 = vrot.lane.b32.xlu0 %v731, 96
    %v733 = vpop.permute.xlu0 %732
    %v735 = vsel %vm511, %v560, 0
    %v738 = vsel %vm511, %v733, 0
    %740 = vmatpush.bf16.xpose.msra.mxu0 0
    %741 = vmatpush.bf16.xpose.msra.mxu0 0
    %742 = vmatpush.bf16.xpose.msra.mxu0 0
    %743 = vmatpush.bf16.xpose.msra.mxu0 0
    %744 = vmatpush.bf16.xpose.msra.mxu0 0
    %745 = vmatpush.bf16.xpose.msra.mxu0 0
    %746 = vmatpush.bf16.xpose.msra.mxu0 0
    %747 = vmatpush.bf16.xpose.msra.mxu0 %v738
    %748 = vmatmul.bf16.gmra.mxu0 %v735
    %v749 = vpop.f32.mrf.mxu0
    %v750 = vadd.f32 0.0, %v749
    %v751 = vpop.f32.mrf.mxu0
    %752 = vdwg.mxu0
    %v753 = vmul.f32 %v582, 0.17677669
    %v754 = vmul.f32 %v606, 0.17677669
    %v755 = vmul.f32 %v630, 0.17677669
    %v756 = vmul.f32 %v654, 0.17677669
    %v757 = vmul.f32 %v678, 0.17677669
    %v758 = vmul.f32 %v702, 0.17677669
    %v759 = vmul.f32 %v726, 0.17677669
    %v760 = vmul.f32 %v750, 0.17677669
    %v761 = vmax.f32 %v753, -60.0
    %v762 = vmax.f32 %v754, -60.0
    %v763 = vmax.f32 %v755, -60.0
    %v764 = vmax.f32 %v756, -60.0
    %v765 = vmax.f32 %v757, -60.0
    %v766 = vmax.f32 %v758, -60.0
    %v767 = vmax.f32 %v759, -60.0
    %v768 = vmax.f32 %v760, -60.0
    %v769 = vsub.f32 0.0, %v761
    %v770 = vsub.f32 0.0, %v762
    %v771 = vsub.f32 0.0, %v763
    %v772 = vsub.f32 0.0, %v764
    %v773 = vsub.f32 0.0, %v765
    %v774 = vsub.f32 0.0, %v766
    %v775 = vsub.f32 0.0, %v767
    %v776 = vsub.f32 0.0, %v768
    %v777 = vmul.f32 %v769, 1.442695
    %v778 = vpow.pop %v777
    %v779 = vmul.f32 %v770, 1.442695
    %v780 = vpow.pop %v779
    %v781 = vmul.f32 %v771, 1.442695
    %v782 = vpow.pop %v781
    %v783 = vmul.f32 %v772, 1.442695
    %v784 = vpow.pop %v783
    %v785 = vmul.f32 %v773, 1.442695
    %v786 = vpow.pop %v785
    %v787 = vmul.f32 %v774, 1.442695
    %v788 = vpow.pop %v787
    %v789 = vmul.f32 %v775, 1.442695
    %v790 = vpow.pop %v789
    %v791 = vmul.f32 %v776, 1.442695
    %v792 = vpow.pop %v791
    %v793 = vmul.f32 %v778, 20.0
    %v794 = vmul.f32 %v780, 20.0
    %v795 = vmul.f32 %v782, 20.0
    %v796 = vmul.f32 %v784, 20.0
    %v797 = vmul.f32 %v786, 20.0
    %v798 = vmul.f32 %v788, 20.0
    %v799 = vmul.f32 %v790, 20.0
    %v800 = vmul.f32 %v792, 20.0
    %v801 = vadd.f32 %v793, 1.0
    %v802 = vadd.f32 %v794, 1.0
    %v803 = vadd.f32 %v795, 1.0
    %v804 = vadd.f32 %v796, 1.0
    %v805 = vadd.f32 %v797, 1.0
    %v806 = vadd.f32 %v798, 1.0
    %v807 = vadd.f32 %v799, 1.0
    %v808 = vadd.f32 %v800, 1.0
    %v809 = vrcp.pop %v801
    %v810 = vrcp.pop %v802
    %v811 = vrcp.pop %v803
    %v812 = vrcp.pop %v804
    %v813 = vrcp.pop %v805
    %v814 = vrcp.pop %v806
    %v815 = vrcp.pop %v807
    %v816 = vrcp.pop %v808
    %v817 = vpack.c.bf16 %v809, %v809
    %v818 = vpack.c.bf16 %v810, %v810
    %v819 = vpack.c.bf16 %v811, %v811
    %v820 = vpack.c.bf16 %v812, %v812
    %v821 = vpack.c.bf16 %v813, %v813
    %v822 = vpack.c.bf16 %v814, %v814
    %v823 = vpack.c.bf16 %v815, %v815
    %v824 = vpack.c.bf16 %v816, %v816
    %825 = vrot.lane.b32.xlu0 %v563, 64
    %v826 = vpop.permute.xlu0 %825
    %vm827 = vcmask 64512
    %v829 = vsel %vm827, %v817, 0
    %vm831 = vcmask 1043456
    %v833 = vsel %vm831, %v826, 0
    %835 = vmatpush.bf16.msra.mxu0 0
    %836 = vmatpush.bf16.msra.mxu0 0
    %837 = vmatpush.bf16.msra.mxu0 0
    %838 = vmatpush.bf16.msra.mxu0 0
    %839 = vmatpush.bf16.msra.mxu0 0
    %840 = vmatpush.bf16.msra.mxu0 0
    %841 = vmatpush.bf16.msra.mxu0 0
    %842 = vmatpush.bf16.msra.mxu0 %v833
    %843 = vmatmul.bf16.gmra.mxu0 %v829
    %v844 = vpop.f32.mrf.mxu0
    %v845 = vadd.f32 0.0, %v844
    %v846 = vpop.f32.mrf.mxu0
    %847 = vdwg.mxu0
    %848 = vrot.lane.b32.xlu0 %v587, 64
    %v849 = vpop.permute.xlu0 %848
    %v851 = vsel %vm827, %v818, 0
    %v854 = vsel %vm831, %v849, 0
    %856 = vmatpush.bf16.msra.mxu0 0
    %857 = vmatpush.bf16.msra.mxu0 0
    %858 = vmatpush.bf16.msra.mxu0 0
    %859 = vmatpush.bf16.msra.mxu0 0
    %860 = vmatpush.bf16.msra.mxu0 0
    %861 = vmatpush.bf16.msra.mxu0 0
    %862 = vmatpush.bf16.msra.mxu0 0
    %863 = vmatpush.bf16.msra.mxu0 %v854
    %864 = vmatmul.bf16.gmra.mxu0 %v851
    %v865 = vpop.f32.mrf.mxu0
    %v866 = vadd.f32 0.0, %v865
    %v867 = vpop.f32.mrf.mxu0
    %868 = vdwg.mxu0
    %869 = vrot.lane.b32.xlu0 %v611, 64
    %v870 = vpop.permute.xlu0 %869
    %v872 = vsel %vm827, %v819, 0
    %v875 = vsel %vm831, %v870, 0
    %877 = vmatpush.bf16.msra.mxu0 0
    %878 = vmatpush.bf16.msra.mxu0 0
    %879 = vmatpush.bf16.msra.mxu0 0
    %880 = vmatpush.bf16.msra.mxu0 0
    %881 = vmatpush.bf16.msra.mxu0 0
    %882 = vmatpush.bf16.msra.mxu0 0
    %883 = vmatpush.bf16.msra.mxu0 0
    %884 = vmatpush.bf16.msra.mxu0 %v875
    %885 = vmatmul.bf16.gmra.mxu0 %v872
    %v886 = vpop.f32.mrf.mxu0
    %v887 = vadd.f32 0.0, %v886
    %v888 = vpop.f32.mrf.mxu0
    %889 = vdwg.mxu0
    %890 = vrot.lane.b32.xlu0 %v635, 64
    %v891 = vpop.permute.xlu0 %890
    %v893 = vsel %vm827, %v820, 0
    %v896 = vsel %vm831, %v891, 0
    %898 = vmatpush.bf16.msra.mxu0 0
    %899 = vmatpush.bf16.msra.mxu0 0
    %900 = vmatpush.bf16.msra.mxu0 0
    %901 = vmatpush.bf16.msra.mxu0 0
    %902 = vmatpush.bf16.msra.mxu0 0
    %903 = vmatpush.bf16.msra.mxu0 0
    %904 = vmatpush.bf16.msra.mxu0 0
    %905 = vmatpush.bf16.msra.mxu0 %v896
    %906 = vmatmul.bf16.gmra.mxu0 %v893
    %v907 = vpop.f32.mrf.mxu0
    %v908 = vadd.f32 0.0, %v907
    %v909 = vpop.f32.mrf.mxu0
    %910 = vdwg.mxu0
    %911 = vrot.lane.b32.xlu0 %v659, 64
    %v912 = vpop.permute.xlu0 %911
    %v914 = vsel %vm827, %v821, 0
    %v917 = vsel %vm831, %v912, 0
    %919 = vmatpush.bf16.msra.mxu0 0
    %920 = vmatpush.bf16.msra.mxu0 0
    %921 = vmatpush.bf16.msra.mxu0 0
    %922 = vmatpush.bf16.msra.mxu0 0
    %923 = vmatpush.bf16.msra.mxu0 0
    %924 = vmatpush.bf16.msra.mxu0 0
    %925 = vmatpush.bf16.msra.mxu0 0
    %926 = vmatpush.bf16.msra.mxu0 %v917
    %927 = vmatmul.bf16.gmra.mxu0 %v914
    %v928 = vpop.f32.mrf.mxu0
    %v929 = vadd.f32 0.0, %v928
    %v930 = vpop.f32.mrf.mxu0
    %931 = vdwg.mxu0
    %932 = vrot.lane.b32.xlu0 %v683, 64
    %v933 = vpop.permute.xlu0 %932
    %v935 = vsel %vm827, %v822, 0
    %v938 = vsel %vm831, %v933, 0
    %940 = vmatpush.bf16.msra.mxu0 0
    %941 = vmatpush.bf16.msra.mxu0 0
    %942 = vmatpush.bf16.msra.mxu0 0
    %943 = vmatpush.bf16.msra.mxu0 0
    %944 = vmatpush.bf16.msra.mxu0 0
    %945 = vmatpush.bf16.msra.mxu0 0
    %946 = vmatpush.bf16.msra.mxu0 0
    %947 = vmatpush.bf16.msra.mxu0 %v938
    %948 = vmatmul.bf16.gmra.mxu0 %v935
    %v949 = vpop.f32.mrf.mxu0
    %v950 = vadd.f32 0.0, %v949
    %v951 = vpop.f32.mrf.mxu0
    %952 = vdwg.mxu0
    %953 = vrot.lane.b32.xlu0 %v707, 64
    %v954 = vpop.permute.xlu0 %953
    %v956 = vsel %vm827, %v823, 0
    %v959 = vsel %vm831, %v954, 0
    %961 = vmatpush.bf16.msra.mxu0 0
    %962 = vmatpush.bf16.msra.mxu0 0
    %963 = vmatpush.bf16.msra.mxu0 0
    %964 = vmatpush.bf16.msra.mxu0 0
    %965 = vmatpush.bf16.msra.mxu0 0
    %966 = vmatpush.bf16.msra.mxu0 0
    %967 = vmatpush.bf16.msra.mxu0 0
    %968 = vmatpush.bf16.msra.mxu0 %v959
    %969 = vmatmul.bf16.gmra.mxu0 %v956
    %v970 = vpop.f32.mrf.mxu0
    %v971 = vadd.f32 0.0, %v970
    %v972 = vpop.f32.mrf.mxu0
    %973 = vdwg.mxu0
    %974 = vrot.lane.b32.xlu0 %v731, 64
    %v975 = vpop.permute.xlu0 %974
    %v977 = vsel %vm827, %v824, 0
    %v980 = vsel %vm831, %v975, 0
    %982 = vmatpush.bf16.msra.mxu0 0
    %983 = vmatpush.bf16.msra.mxu0 0
    %984 = vmatpush.bf16.msra.mxu0 0
    %985 = vmatpush.bf16.msra.mxu0 0
    %986 = vmatpush.bf16.msra.mxu0 0
    %987 = vmatpush.bf16.msra.mxu0 0
    %988 = vmatpush.bf16.msra.mxu0 0
    %989 = vmatpush.bf16.msra.mxu0 %v980
    %990 = vmatmul.bf16.gmra.mxu0 %v977
    %v991 = vpop.f32.mrf.mxu0
    %v992 = vadd.f32 0.0, %v991
    %v993 = vpop.f32.mrf.mxu0
    %994 = vdwg.mxu0
    %v995 = vpack.c.bf16 %v866, %v845
    %v996 = vpack.c.bf16 %v908, %v887
    %v997 = vpack.c.bf16 %v950, %v929
    %v998 = vpack.c.bf16 %v992, %v971
    %v999 = vld [vmem:[%s5] sm:$0xf]
    %v1000 = vld [vmem:[%s5 + $0x4] sm:$0xf]
    %v1001 = vld [vmem:[%s5 + $0x8] sm:$0xf]
    %v1002 = vld [vmem:[%s5 + $0xc] sm:$0xf]
    %v1003 = vld [vmem:[#allocation5] sm:$0x1]
    %v1005 = vperm.slane %v1003, 0
    %v1011 = vunpack.c.l.b16 %v999
    %v1012 = vunpack.c.l.b16 %v1000
    %v1013 = vunpack.c.l.b16 %v1001
    %v1014 = vunpack.c.l.b16 %v1002
    %v1015 = vpack.c.b16 %v1012, %v1011
    %v1016 = vpack.c.b16 %v1014, %v1013
    %v1020 = vsel %vm511, %v995, 0
    %v1023 = vsel %vm511, %v996, 0
    %v1026 = vsel %vm511, %v997, 0
    %v1029 = vsel %vm511, %v998, 0
    %1031 = vmatpush.bf16.msra.mxu0 0
    %1032 = vmatpush.bf16.msra.mxu0 0
    %1033 = vmatpush.bf16.msra.mxu0 0
    %1034 = vmatpush.bf16.msra.mxu0 0
    %1035 = vmatpush.bf16.msra.mxu0 0
    %1036 = vmatpush.bf16.msra.mxu0 0
    %1037 = vmatpush.bf16.msra.mxu0 %v1016
    %1038 = vmatpush.bf16.msra.mxu0 %v1015
    %1039 = vmatmul.bf16.gmra.mxu0 %v1020
    %v1040 = vpop.f32.mrf.mxu0
    %v1041 = vadd.f32 %v1005, %v1040
    %v1042 = vpop.f32.mrf.mxu0
    %v1043 = vadd.f32 %v1005, %v1042
    %1044 = vmatmul.bf16.gmra.mxu0 %v1023
    %v1045 = vpop.f32.mrf.mxu0
    %v1046 = vadd.f32 %v1005, %v1045
    %v1047 = vpop.f32.mrf.mxu0
    %v1048 = vadd.f32 %v1005, %v1047
    %1049 = vmatmul.bf16.gmra.mxu0 %v1026
    %v1050 = vpop.f32.mrf.mxu0
    %v1051 = vadd.f32 %v1005, %v1050
    %v1052 = vpop.f32.mrf.mxu0
    %v1053 = vadd.f32 %v1005, %v1052
    %1054 = vmatmul.bf16.gmra.mxu0 %v1029
    %v1055 = vpop.f32.mrf.mxu0
    %v1056 = vadd.f32 %v1005, %v1055
    %v1057 = vpop.f32.mrf.mxu0
    %v1058 = vadd.f32 %v1005, %v1057
    %1059 = vdwg.mxu0
    %v1060 = vpack.c.bf16 %v1043, %v1041
    %v1061 = vpack.c.bf16 %v1048, %v1046
    %v1062 = vpack.c.bf16 %v1053, %v1051
    %v1063 = vpack.c.bf16 %v1058, %v1056
    %v1064 = vld [vmem:[%s7] sm:$0xf]
    %v1065 = vld [vmem:[%s7 + $0x4] sm:$0xf]
    %v1066 = vld [vmem:[%s7 + $0x8] sm:$0xf]
    %v1067 = vld [vmem:[%s7 + $0xc] sm:$0xf]
    %v1068 = vld [vmem:[#allocation7] sm:$0x1]
    %v1070 = vperm.slane %v1068, 0
    %v1076 = vunpack.c.l.b16 %v1064
    %v1077 = vunpack.c.l.b16 %v1065
    %v1078 = vunpack.c.l.b16 %v1066
    %v1079 = vunpack.c.l.b16 %v1067
    %v1080 = vpack.c.b16 %v1077, %v1076
    %v1081 = vpack.c.b16 %v1079, %v1078
    %v1085 = vsel %vm511, %v1060, 0
    %v1088 = vsel %vm511, %v1061, 0
    %v1091 = vsel %vm511, %v1062, 0
    %v1094 = vsel %vm511, %v1063, 0
    %1096 = vmatpush.bf16.msra.mxu0 0
    %1097 = vmatpush.bf16.msra.mxu0 0
    %1098 = vmatpush.bf16.msra.mxu0 0
    %1099 = vmatpush.bf16.msra.mxu0 0
    %1100 = vmatpush.bf16.msra.mxu0 0
    %1101 = vmatpush.bf16.msra.mxu0 0
    %1102 = vmatpush.bf16.msra.mxu0 %v1081
    %1103 = vmatpush.bf16.msra.mxu0 %v1080
    %1104 = vmatmul.bf16.gmra.mxu0 %v1085
    %v1105 = vpop.f32.mrf.mxu0
    %v1106 = vadd.f32 %v1070, %v1105
    %v1107 = vpop.f32.mrf.mxu0
    %v1108 = vadd.f32 %v1070, %v1107
    %1109 = vmatmul.bf16.gmra.mxu0 %v1088
    %v1110 = vpop.f32.mrf.mxu0
    %v1111 = vadd.f32 %v1070, %v1110
    %v1112 = vpop.f32.mrf.mxu0
    %v1113 = vadd.f32 %v1070, %v1112
    %1114 = vmatmul.bf16.gmra.mxu0 %v1091
    %v1115 = vpop.f32.mrf.mxu0
    %v1116 = vadd.f32 %v1070, %v1115
    %v1117 = vpop.f32.mrf.mxu0
    %v1118 = vadd.f32 %v1070, %v1117
    %1119 = vmatmul.bf16.gmra.mxu0 %v1094
    %v1120 = vpop.f32.mrf.mxu0
    %v1121 = vadd.f32 %v1070, %v1120
    %v1122 = vpop.f32.mrf.mxu0
    %v1123 = vadd.f32 %v1070, %v1122
    %1124 = vdwg.mxu0
    %v1125 = vmax.f32 %v1106, 0.0
    %v1126 = vmax.f32 %v1108, 0.0
    %v1127 = vmax.f32 %v1111, 0.0
    %v1128 = vmax.f32 %v1113, 0.0
    %v1129 = vmax.f32 %v1116, 0.0
    %v1130 = vmax.f32 %v1118, 0.0
    %v1131 = vmax.f32 %v1121, 0.0
    %v1132 = vmax.f32 %v1123, 0.0
    %v1133 = vpack.c.bf16 %v1126, %v1125
    %v1134 = vpack.c.bf16 %v1128, %v1127
    %v1135 = vpack.c.bf16 %v1130, %v1129
    %v1136 = vpack.c.bf16 %v1132, %v1131
    %v1137 = vld [vmem:[#allocation8] sm:$0xf]
    %v1138 = vld [vmem:[#allocation8 + $0x4] sm:$0xf]
    %v1139 = vld [vmem:[#allocation8 + $0x8] sm:$0xf]
    %v1140 = vld [vmem:[#allocation8 + $0xc] sm:$0xf]
    %v1141 = vld [vmem:[#allocation10] sm:$0x1]
    %v1143 = vperm.slane %v1141, 0
    %v1149 = vunpack.c.l.b16 %v1137
    %v1150 = vunpack.c.l.b16 %v1138
    %v1151 = vunpack.c.l.b16 %v1139
    %v1152 = vunpack.c.l.b16 %v1140
    %v1153 = vpack.c.b16 %v1150, %v1149
    %v1154 = vpack.c.b16 %v1152, %v1151
    %v1158 = vsel %vm511, %v1133, 0
    %v1161 = vsel %vm511, %v1134, 0
    %v1164 = vsel %vm511, %v1135, 0
    %v1167 = vsel %vm511, %v1136, 0
    %1169 = vmatpush.bf16.msra.mxu0 0
    %1170 = vmatpush.bf16.msra.mxu0 0
    %1171 = vmatpush.bf16.msra.mxu0 0
    %1172 = vmatpush.bf16.msra.mxu0 0
    %1173 = vmatpush.bf16.msra.mxu0 0
    %1174 = vmatpush.bf16.msra.mxu0 0
    %1175 = vmatpush.bf16.msra.mxu0 %v1154
    %1176 = vmatpush.bf16.msra.mxu0 %v1153
    %1177 = vmatmul.bf16.gmra.mxu0 %v1158
    %v1178 = vpop.f32.mrf.mxu0
    %v1179 = vadd.f32 %v1143, %v1178
    %v1180 = vpop.f32.mrf.mxu0
    %v1181 = vadd.f32 %v1143, %v1180
    %1182 = vmatmul.bf16.gmra.mxu0 %v1161
    %v1183 = vpop.f32.mrf.mxu0
    %v1184 = vadd.f32 %v1143, %v1183
    %v1185 = vpop.f32.mrf.mxu0
    %v1186 = vadd.f32 %v1143, %v1185
    %1187 = vmatmul.bf16.gmra.mxu0 %v1164
    %v1188 = vpop.f32.mrf.mxu0
    %v1189 = vadd.f32 %v1143, %v1188
    %v1190 = vpop.f32.mrf.mxu0
    %v1191 = vadd.f32 %v1143, %v1190
    %1192 = vmatmul.bf16.gmra.mxu0 %v1167
    %v1193 = vpop.f32.mrf.mxu0
    %v1194 = vadd.f32 %v1143, %v1193
    %v1195 = vpop.f32.mrf.mxu0
    %v1196 = vadd.f32 %v1143, %v1195
    %1197 = vdwg.mxu0
    %v1198 = vmax.f32 %v1179, -60.0
    %v1199 = vmax.f32 %v1181, -60.0
    %v1200 = vmax.f32 %v1184, -60.0
    %v1201 = vmax.f32 %v1186, -60.0
    %v1202 = vmax.f32 %v1189, -60.0
    %v1203 = vmax.f32 %v1191, -60.0
    %v1204 = vmax.f32 %v1194, -60.0
    %v1205 = vmax.f32 %v1196, -60.0
    %v1206 = vsub.f32 0.0, %v1198
    %v1207 = vsub.f32 0.0, %v1199
    %v1208 = vsub.f32 0.0, %v1200
    %v1209 = vsub.f32 0.0, %v1201
    %v1210 = vsub.f32 0.0, %v1202
    %v1211 = vsub.f32 0.0, %v1203
    %v1212 = vsub.f32 0.0, %v1204
    %v1213 = vsub.f32 0.0, %v1205
    %v1214 = vmul.f32 %v1206, 1.442695
    %v1215 = vpow.pop %v1214
    %v1216 = vmul.f32 %v1207, 1.442695
    %v1217 = vpow.pop %v1216
    %v1218 = vmul.f32 %v1208, 1.442695
    %v1219 = vpow.pop %v1218
    %v1220 = vmul.f32 %v1209, 1.442695
    %v1221 = vpow.pop %v1220
    %v1222 = vmul.f32 %v1210, 1.442695
    %v1223 = vpow.pop %v1222
    %v1224 = vmul.f32 %v1211, 1.442695
    %v1225 = vpow.pop %v1224
    %v1226 = vmul.f32 %v1212, 1.442695
    %v1227 = vpow.pop %v1226
    %v1228 = vmul.f32 %v1213, 1.442695
    %v1229 = vpow.pop %v1228
    %v1230 = vmul.f32 %v1215, 20.0
    %v1231 = vmul.f32 %v1217, 20.0
    %v1232 = vmul.f32 %v1219, 20.0
    %v1233 = vmul.f32 %v1221, 20.0
    %v1234 = vmul.f32 %v1223, 20.0
    %v1235 = vmul.f32 %v1225, 20.0
    %v1236 = vmul.f32 %v1227, 20.0
    %v1237 = vmul.f32 %v1229, 20.0
    %v1238 = vadd.f32 %v1230, 1.0
    %v1239 = vadd.f32 %v1231, 1.0
    %v1240 = vadd.f32 %v1232, 1.0
    %v1241 = vadd.f32 %v1233, 1.0
    %v1242 = vadd.f32 %v1234, 1.0
    %v1243 = vadd.f32 %v1235, 1.0
    %v1244 = vadd.f32 %v1236, 1.0
    %v1245 = vadd.f32 %v1237, 1.0
    %v1246 = vrcp.pop %v1238
    %v1247 = vrcp.pop %v1239
    %v1248 = vrcp.pop %v1240
    %v1249 = vrcp.pop %v1241
    %v1250 = vrcp.pop %v1242
    %v1251 = vrcp.pop %v1243
    %v1252 = vrcp.pop %v1244
    %v1253 = vrcp.pop %v1245
    %1255 = vset.pattern.permute.xlu0 32
    %1256 = vperm.xlu0 %1255, %v1246
    %v1257 = vpop.permute.xlu0 %1256
    %1260 = vset.pattern.permute.xlu0 32
    %1261 = vperm.xlu0 %1260, %v1247
    %v1262 = vpop.permute.xlu0 %1261
    %1265 = vset.pattern.permute.xlu0 32
    %1266 = vperm.xlu0 %1265, %v1248
    %v1267 = vpop.permute.xlu0 %1266
    %1270 = vset.pattern.permute.xlu0 32
    %1271 = vperm.xlu0 %1270, %v1249
    %v1272 = vpop.permute.xlu0 %1271
    %1275 = vset.pattern.permute.xlu0 32
    %1276 = vperm.xlu0 %1275, %v1250
    %v1277 = vpop.permute.xlu0 %1276
    %1280 = vset.pattern.permute.xlu0 32
    %1281 = vperm.xlu0 %1280, %v1251
    %v1282 = vpop.permute.xlu0 %1281
    %1285 = vset.pattern.permute.xlu0 32
    %1286 = vperm.xlu0 %1285, %v1252
    %v1287 = vpop.permute.xlu0 %1286
    %1290 = vset.pattern.permute.xlu0 32
    %1291 = vperm.xlu0 %1290, %v1253
    %v1292 = vpop.permute.xlu0 %1291
    %v1294 = vmul.f32 %v1179, %v1257
    %v1295 = vmul.f32 %v1181, %v1262
    %v1296 = vmul.f32 %v1184, %v1267
    %v1297 = vmul.f32 %v1186, %v1272
    %v1298 = vmul.f32 %v1189, %v1277
    %v1299 = vmul.f32 %v1191, %v1282
    %v1300 = vmul.f32 %v1194, %v1287
    %v1301 = vmul.f32 %v1196, %v1292
    %v1302 = vsel %vm511, %v1294, 0.0
    %v1303 = vrot.slane %v1302, 4
    %v1304 = vadd.f32 %v1302, %v1303
    %v1305 = vrot.slane %v1304, 2
    %v1306 = vadd.f32 %v1304, %v1305
    %v1307 = vrot.slane %v1306, 1
    %v1308 = vadd.f32 %v1306, %v1307
    %v1309 = vsel %vm511, %v1295, 0.0
    %v1310 = vrot.slane %v1309, 4
    %v1311 = vadd.f32 %v1309, %v1310
    %v1312 = vrot.slane %v1311, 2
    %v1313 = vadd.f32 %v1311, %v1312
    %v1314 = vrot.slane %v1313, 1
    %v1315 = vadd.f32 %v1313, %v1314
    %v1316 = vsel %vm511, %v1296, 0.0
    %v1317 = vrot.slane %v1316, 4
    %v1318 = vadd.f32 %v1316, %v1317
    %v1319 = vrot.slane %v1318, 2
    %v1320 = vadd.f32 %v1318, %v1319
    %v1321 = vrot.slane %v1320, 1
    %v1322 = vadd.f32 %v1320, %v1321
    %v1323 = vsel %vm511, %v1297, 0.0
    %v1324 = vrot.slane %v1323, 4
    %v1325 = vadd.f32 %v1323, %v1324
    %v1326 = vrot.slane %v1325, 2
    %v1327 = vadd.f32 %v1325, %v1326
    %v1328 = vrot.slane %v1327, 1
    %v1329 = vadd.f32 %v1327, %v1328
    %v1330 = vsel %vm511, %v1298, 0.0
    %v1331 = vrot.slane %v1330, 4
    %v1332 = vadd.f32 %v1330, %v1331
    %v1333 = vrot.slane %v1332, 2
    %v1334 = vadd.f32 %v1332, %v1333
    %v1335 = vrot.slane %v1334, 1
    %v1336 = vadd.f32 %v1334, %v1335
    %v1337 = vsel %vm511, %v1299, 0.0
    %v1338 = vrot.slane %v1337, 4
    %v1339 = vadd.f32 %v1337, %v1338
    %v1340 = vrot.slane %v1339, 2
    %v1341 = vadd.f32 %v1339, %v1340
    %v1342 = vrot.slane %v1341, 1
    %v1343 = vadd.f32 %v1341, %v1342
    %v1344 = vsel %vm511, %v1300, 0.0
    %v1345 = vrot.slane %v1344, 4
    %v1346 = vadd.f32 %v1344, %v1345
    %v1347 = vrot.slane %v1346, 2
    %v1348 = vadd.f32 %v1346, %v1347
    %v1349 = vrot.slane %v1348, 1
    %v1350 = vadd.f32 %v1348, %v1349
    %v1351 = vsel %vm511, %v1301, 0.0
    %v1352 = vrot.slane %v1351, 4
    %v1353 = vadd.f32 %v1351, %v1352
    %v1354 = vrot.slane %v1353, 2
    %v1355 = vadd.f32 %v1353, %v1354
    %v1356 = vrot.slane %v1355, 1
    %v1357 = vadd.f32 %v1355, %v1356
    %v1358 = vpack.c.bf16 %v1308, %v1308
    %v1359 = vpack.c.bf16 %v1315, %v1315
    %v1360 = vpack.c.bf16 %v1322, %v1322
    %v1361 = vpack.c.bf16 %v1329, %v1329
    %v1362 = vpack.c.bf16 %v1336, %v1336
    %v1363 = vpack.c.bf16 %v1343, %v1343
    %v1364 = vpack.c.bf16 %v1350, %v1350
    %v1365 = vpack.c.bf16 %v1357, %v1357
    %v1366 = vld [vmem:[#allocation11] sm:$0xf]
    %v1367 = vld [vmem:[#allocation11 + $0x4] sm:$0xf]
    %v1368 = vld [vmem:[#allocation11 + $0x8] sm:$0xf]
    %v1369 = vld [vmem:[#allocation11 + $0xc] sm:$0xf]
    %v1370 = vld [vmem:[#allocation13] sm:$0x1]
    %v1372 = vperm.slane %v1370, 0
    %v1382 = vunpack.c.l.b16 %v1358
    %v1383 = vunpack.c.l.b16 %v1359
    %v1384 = vunpack.c.l.b16 %v1360
    %v1385 = vunpack.c.l.b16 %v1361
    %v1386 = vunpack.c.l.b16 %v1362
    %v1387 = vunpack.c.l.b16 %v1363
    %v1388 = vunpack.c.l.b16 %v1364
    %v1389 = vunpack.c.l.b16 %v1365
    %vm1390 = vcmask 1041409
    %v1391 = vsel %vm1390, %v1383, %v1382
    %vm1392 = vcmask 1042434
    %v1393 = vsel %vm1392, %v1384, %v1391
    %vm1394 = vcmask 1043459
    %v1395 = vsel %vm1394, %v1385, %v1393
    %vm1396 = vcmask 1044484
    %v1397 = vsel %vm1396, %v1386, %v1395
    %vm1398 = vcmask 1045509
    %v1399 = vsel %vm1398, %v1387, %v1397
    %vm1400 = vcmask 1046534
    %v1401 = vsel %vm1400, %v1388, %v1399
    %vm1402 = vcmask 1047559
    %v1403 = vsel %vm1402, %v1389, %v1401
    %v1404 = vpack.c.b16 %v1403, %v1403
    %v1409 = vunpack.c.l.b16 %v1366
    %v1410 = vunpack.c.l.b16 %v1367
    %v1411 = vunpack.c.l.b16 %v1368
    %v1412 = vunpack.c.l.b16 %v1369
    %v1413 = vpack.c.b16 %v1410, %v1409
    %v1414 = vpack.c.b16 %v1412, %v1411
    %v1418 = vsel %vm511, %v1404, 0
    %1420 = vmatpush.bf16.msra.mxu0 0
    %1421 = vmatpush.bf16.msra.mxu0 0
    %1422 = vmatpush.bf16.msra.mxu0 0
    %1423 = vmatpush.bf16.msra.mxu0 0
    %1424 = vmatpush.bf16.msra.mxu0 0
    %1425 = vmatpush.bf16.msra.mxu0 0
    %1426 = vmatpush.bf16.msra.mxu0 %v1414
    %1427 = vmatpush.bf16.msra.mxu0 %v1413
    %1428 = vmatmul.bf16.gmra.mxu0 %v1418
    %v1429 = vpop.f32.mrf.mxu0
    %v1430 = vadd.f32 %v1372, %v1429
    %v1431 = vpop.f32.mrf.mxu0
    %1432 = vdwg.mxu0
    %v1433 = vld [vmem:[#allocation14] sm:$0xf]
    %v1434 = vld [vmem:[#allocation14 + $0x4] sm:$0xf]
    %v1435 = vld [vmem:[#allocation14 + $0x8] sm:$0xf]
    %v1436 = vld [vmem:[#allocation14 + $0xc] sm:$0xf]
    %v1437 = vld [vmem:[#allocation16] sm:$0x1]
    %v1439 = vperm.slane %v1437, 0
    %v1445 = vunpack.c.l.b16 %v1433
    %v1446 = vunpack.c.l.b16 %v1434
    %v1447 = vunpack.c.l.b16 %v1435
    %v1448 = vunpack.c.l.b16 %v1436
    %v1449 = vpack.c.b16 %v1446, %v1445
    %v1450 = vpack.c.b16 %v1448, %v1447
    %1453 = vmatpush.bf16.msra.mxu0 0
    %1454 = vmatpush.bf16.msra.mxu0 0
    %1455 = vmatpush.bf16.msra.mxu0 0
    %1456 = vmatpush.bf16.msra.mxu0 0
    %1457 = vmatpush.bf16.msra.mxu0 0
    %1458 = vmatpush.bf16.msra.mxu0 0
    %1459 = vmatpush.bf16.msra.mxu0 %v1450
    %1460 = vmatpush.bf16.msra.mxu0 %v1449
    %1461 = vmatmul.bf16.gmra.mxu0 %v1158
    %v1462 = vpop.f32.mrf.mxu0
    %v1463 = vadd.f32 %v1439, %v1462
    %v1464 = vpop.f32.mrf.mxu0
    %v1465 = vadd.f32 %v1439, %v1464
    %1466 = vmatmul.bf16.gmra.mxu0 %v1161
    %v1467 = vpop.f32.mrf.mxu0
    %v1468 = vadd.f32 %v1439, %v1467
    %v1469 = vpop.f32.mrf.mxu0
    %v1470 = vadd.f32 %v1439, %v1469
    %1471 = vmatmul.bf16.gmra.mxu0 %v1164
    %v1472 = vpop.f32.mrf.mxu0
    %v1473 = vadd.f32 %v1439, %v1472
    %v1474 = vpop.f32.mrf.mxu0
    %v1475 = vadd.f32 %v1439, %v1474
    %1476 = vmatmul.bf16.gmra.mxu0 %v1167
    %v1477 = vpop.f32.mrf.mxu0
    %v1478 = vadd.f32 %v1439, %v1477
    %v1479 = vpop.f32.mrf.mxu0
    %v1480 = vadd.f32 %v1439, %v1479
    %1481 = vdwg.mxu0
    %v1483 = vrot.slane %v1430, 1
    %v1484 = vrot.slane %v1430, 2
    %v1485 = vrot.slane %v1430, 3
    %v1486 = vrot.slane %v1430, 4
    %v1487 = vrot.slane %v1430, 5
    %v1488 = vrot.slane %v1430, 6
    %v1489 = vrot.slane %v1430, 7
    %v1490 = vperm.slane %v1430, 0
    %v1491 = vperm.slane %v1483, 0
    %v1492 = vperm.slane %v1484, 0
    %v1493 = vperm.slane %v1485, 0
    %v1494 = vperm.slane %v1486, 0
    %v1495 = vperm.slane %v1487, 0
    %v1496 = vperm.slane %v1488, 0
    %v1497 = vperm.slane %v1489, 0
    %v1506 = vmul.f32 %v1463, %v1490
    %v1507 = vmul.f32 %v1465, %v1491
    %v1508 = vmul.f32 %v1468, %v1492
    %v1509 = vmul.f32 %v1470, %v1493
    %v1510 = vmul.f32 %v1473, %v1494
    %v1511 = vmul.f32 %v1475, %v1495
    %v1512 = vmul.f32 %v1478, %v1496
    %v1513 = vmul.f32 %v1480, %v1497
    %v1514 = vsel %vm511, %v1506, 0.0
    %1515 = vadd.xlane.f32.xlu0 %v1514
    %v1516 = vpop.xlane.xlu0 %1515
    %v1517 = vsel %vm511, %v1507, 0.0
    %1518 = vadd.xlane.f32.xlu0 %v1517
    %v1519 = vpop.xlane.xlu0 %1518
    %v1520 = vsel %vm511, %v1508, 0.0
    %1521 = vadd.xlane.f32.xlu0 %v1520
    %v1522 = vpop.xlane.xlu0 %1521
    %v1523 = vsel %vm511, %v1509, 0.0
    %1524 = vadd.xlane.f32.xlu0 %v1523
    %v1525 = vpop.xlane.xlu0 %1524
    %v1526 = vsel %vm511, %v1510, 0.0
    %1527 = vadd.xlane.f32.xlu0 %v1526
    %v1528 = vpop.xlane.xlu0 %1527
    %v1529 = vsel %vm511, %v1511, 0.0
    %1530 = vadd.xlane.f32.xlu0 %v1529
    %v1531 = vpop.xlane.xlu0 %1530
    %v1532 = vsel %vm511, %v1512, 0.0
    %1533 = vadd.xlane.f32.xlu0 %v1532
    %v1534 = vpop.xlane.xlu0 %1533
    %v1535 = vsel %vm511, %v1513, 0.0
    %1536 = vadd.xlane.f32.xlu0 %v1535
    %v1537 = vpop.xlane.xlu0 %1536
    %v1538 = vmax.f32 %v1516, -60.0
    %v1539 = vmax.f32 %v1519, -60.0
    %v1540 = vmax.f32 %v1522, -60.0
    %v1541 = vmax.f32 %v1525, -60.0
    %v1542 = vmax.f32 %v1528, -60.0
    %v1543 = vmax.f32 %v1531, -60.0
    %v1544 = vmax.f32 %v1534, -60.0
    %v1545 = vmax.f32 %v1537, -60.0
    %v1546 = vsub.f32 0.0, %v1538
    %v1547 = vsub.f32 0.0, %v1539
    %v1548 = vsub.f32 0.0, %v1540
    %v1549 = vsub.f32 0.0, %v1541
    %v1550 = vsub.f32 0.0, %v1542
    %v1551 = vsub.f32 0.0, %v1543
    %v1552 = vsub.f32 0.0, %v1544
    %v1553 = vsub.f32 0.0, %v1545
    %v1554 = vmul.f32 %v1546, 1.442695
    %v1555 = vpow.pop %v1554
    %v1556 = vmul.f32 %v1547, 1.442695
    %v1557 = vpow.pop %v1556
    %v1558 = vmul.f32 %v1548, 1.442695
    %v1559 = vpow.pop %v1558
    %v1560 = vmul.f32 %v1549, 1.442695
    %v1561 = vpow.pop %v1560
    %v1562 = vmul.f32 %v1550, 1.442695
    %v1563 = vpow.pop %v1562
    %v1564 = vmul.f32 %v1551, 1.442695
    %v1565 = vpow.pop %v1564
    %v1566 = vmul.f32 %v1552, 1.442695
    %v1567 = vpow.pop %v1566
    %v1568 = vmul.f32 %v1553, 1.442695
    %v1569 = vpow.pop %v1568
    %v1570 = vadd.f32 %v1555, 1.0
    %v1571 = vadd.f32 %v1557, 1.0
    %v1572 = vadd.f32 %v1559, 1.0
    %v1573 = vadd.f32 %v1561, 1.0
    %v1574 = vadd.f32 %v1563, 1.0
    %v1575 = vadd.f32 %v1565, 1.0
    %v1576 = vadd.f32 %v1567, 1.0
    %v1577 = vadd.f32 %v1569, 1.0
    %v1578 = vrcp.pop %v1570
    %v1579 = vrcp.pop %v1571
    %v1580 = vrcp.pop %v1572
    %v1581 = vrcp.pop %v1573
    %v1582 = vrcp.pop %v1574
    %v1583 = vrcp.pop %v1575
    %v1584 = vrcp.pop %v1576
    %v1585 = vrcp.pop %v1577
    %v1586 = vmul.f32 %v1463, %v1578
    %v1587 = vmul.f32 %v1465, %v1579
    %v1588 = vmul.f32 %v1468, %v1580
    %v1589 = vmul.f32 %v1470, %v1581
    %v1590 = vmul.f32 %v1473, %v1582
    %v1591 = vmul.f32 %v1475, %v1583
    %v1592 = vmul.f32 %v1478, %v1584
    %v1593 = vmul.f32 %v1480, %v1585
    %vm1594 = vcmask 523520
    %v1595 = vsel %vm1594, %v1586, 0.0
    %v1596 = vrot.slane %v1595, 4
    %v1597 = vadd.f32 %v1595, %v1596
    %v1598 = vrot.slane %v1597, 2
    %v1599 = vadd.f32 %v1597, %v1598
    %v1600 = vrot.slane %v1599, 1
    %v1601 = vadd.f32 %v1599, %v1600
    %v1602 = vsel %vm1594, %v1587, 0.0
    %v1603 = vrot.slane %v1602, 4
    %v1604 = vadd.f32 %v1602, %v1603
    %v1605 = vrot.slane %v1604, 2
    %v1606 = vadd.f32 %v1604, %v1605
    %v1607 = vrot.slane %v1606, 1
    %v1608 = vadd.f32 %v1606, %v1607
    %v1609 = vsel %vm1594, %v1588, 0.0
    %v1610 = vrot.slane %v1609, 4
    %v1611 = vadd.f32 %v1609, %v1610
    %v1612 = vrot.slane %v1611, 2
    %v1613 = vadd.f32 %v1611, %v1612
    %v1614 = vrot.slane %v1613, 1
    %v1615 = vadd.f32 %v1613, %v1614
    %v1616 = vsel %vm1594, %v1589, 0.0
    %v1617 = vrot.slane %v1616, 4
    %v1618 = vadd.f32 %v1616, %v1617
    %v1619 = vrot.slane %v1618, 2
    %v1620 = vadd.f32 %v1618, %v1619
    %v1621 = vrot.slane %v1620, 1
    %v1622 = vadd.f32 %v1620, %v1621
    %v1623 = vsel %vm1594, %v1590, 0.0
    %v1624 = vrot.slane %v1623, 4
    %v1625 = vadd.f32 %v1623, %v1624
    %v1626 = vrot.slane %v1625, 2
    %v1627 = vadd.f32 %v1625, %v1626
    %v1628 = vrot.slane %v1627, 1
    %v1629 = vadd.f32 %v1627, %v1628
    %v1630 = vsel %vm1594, %v1591, 0.0
    %v1631 = vrot.slane %v1630, 4
    %v1632 = vadd.f32 %v1630, %v1631
    %v1633 = vrot.slane %v1632, 2
    %v1634 = vadd.f32 %v1632, %v1633
    %v1635 = vrot.slane %v1634, 1
    %v1636 = vadd.f32 %v1634, %v1635
    %v1637 = vsel %vm1594, %v1592, 0.0
    %v1638 = vrot.slane %v1637, 4
    %v1639 = vadd.f32 %v1637, %v1638
    %v1640 = vrot.slane %v1639, 2
    %v1641 = vadd.f32 %v1639, %v1640
    %v1642 = vrot.slane %v1641, 1
    %v1643 = vadd.f32 %v1641, %v1642
    %v1644 = vsel %vm1594, %v1593, 0.0
    %v1645 = vrot.slane %v1644, 4
    %v1646 = vadd.f32 %v1644, %v1645
    %v1647 = vrot.slane %v1646, 2
    %v1648 = vadd.f32 %v1646, %v1647
    %v1649 = vrot.slane %v1648, 1
    %v1650 = vadd.f32 %v1648, %v1649
    %v1651 = vpack.c.bf16 %v1601, %v1601
    %v1652 = vpack.c.bf16 %v1608, %v1608
    %v1653 = vpack.c.bf16 %v1615, %v1615
    %v1654 = vpack.c.bf16 %v1622, %v1622
    %v1655 = vpack.c.bf16 %v1629, %v1629
    %v1656 = vpack.c.bf16 %v1636, %v1636
    %v1657 = vpack.c.bf16 %v1643, %v1643
    %v1658 = vpack.c.bf16 %v1650, %v1650
    %v1659 = vld [vmem:[#allocation17] sm:$0xf]
    %v1660 = vld [vmem:[#allocation17 + $0x4] sm:$0xf]
    %v1661 = vld [vmem:[#allocation17 + $0x8] sm:$0xf]
    %v1662 = vld [vmem:[#allocation17 + $0xc] sm:$0xf]
    %v1663 = vld [vmem:[#allocation19] sm:$0x1]
    %v1665 = vperm.slane %v1663, 0
    %v1675 = vunpack.c.l.b16 %v1651
    %v1676 = vunpack.c.l.b16 %v1652
    %v1677 = vunpack.c.l.b16 %v1653
    %v1678 = vunpack.c.l.b16 %v1654
    %v1679 = vunpack.c.l.b16 %v1655
    %v1680 = vunpack.c.l.b16 %v1656
    %v1681 = vunpack.c.l.b16 %v1657
    %v1682 = vunpack.c.l.b16 %v1658
    %v1683 = vsel %vm1390, %v1676, %v1675
    %v1684 = vsel %vm1392, %v1677, %v1683
    %v1685 = vsel %vm1394, %v1678, %v1684
    %v1686 = vsel %vm1396, %v1679, %v1685
    %v1687 = vsel %vm1398, %v1680, %v1686
    %v1688 = vsel %vm1400, %v1681, %v1687
    %v1689 = vsel %vm1402, %v1682, %v1688
    %v1690 = vpack.c.b16 %v1689, %v1689
    %1691 = vrot.lane.b32.xlu0 %v1690, 96
    %v1692 = vpop.permute.xlu0 %1691
    %v1697 = vunpack.c.l.b16 %v1659
    %v1698 = vunpack.c.l.b16 %v1660
    %v1699 = vunpack.c.l.b16 %v1661
    %v1700 = vunpack.c.l.b16 %v1662
    %v1701 = vpack.c.b16 %v1698, %v1697
    %v1702 = vpack.c.b16 %v1700, %v1699
    %v1706 = vsel %vm511, %v1692, 0
    %1708 = vmatpush.bf16.msra.mxu0 0
    %1709 = vmatpush.bf16.msra.mxu0 0
    %1710 = vmatpush.bf16.msra.mxu0 0
    %1711 = vmatpush.bf16.msra.mxu0 0
    %1712 = vmatpush.bf16.msra.mxu0 0
    %1713 = vmatpush.bf16.msra.mxu0 0
    %1714 = vmatpush.bf16.msra.mxu0 %v1702
    %1715 = vmatpush.bf16.msra.mxu0 %v1701
    %1716 = vmatmul.bf16.gmra.mxu0 %v1706
    %v1717 = vpop.f32.mrf.mxu0
    %v1718 = vadd.f32 %v1665, %v1717
    %v1719 = vpop.f32.mrf.mxu0
    %1720 = vdwg.mxu0
    %v1721 = vmax.f32 %v1718, 0.0
    %v1722 = vpack.c.bf16 %v1721, %v1721
    %v1723 = vld [vmem:[%s17] sm:$0xf]
    %v1724 = vld [vmem:[%s17 + $0x4] sm:$0xf]
    %v1725 = vld [vmem:[%s17 + $0x8] sm:$0xf]
    %v1726 = vld [vmem:[%s17 + $0xc] sm:$0xf]
    %v1727 = vld [vmem:[%s17 + $0x10] sm:$0xf]
    %v1728 = vld [vmem:[%s17 + $0x14] sm:$0xf]
    %v1729 = vld [vmem:[%s17 + $0x18] sm:$0xf]
    %v1730 = vld [vmem:[%s17 + $0x1c] sm:$0xf]
    %v1731 = vld [vmem:[%s17 + $0x20] sm:$0xf]
    %v1732 = vld [vmem:[%s17 + $0x24] sm:$0xf]
    %v1733 = vld [vmem:[%s17 + $0x28] sm:$0xf]
    %v1734 = vld [vmem:[%s17 + $0x2c] sm:$0xf]
    %v1735 = vld [vmem:[%s17 + $0x30] sm:$0xf]
    %v1736 = vld [vmem:[%s17 + $0x34] sm:$0xf]
    %v1737 = vld [vmem:[%s17 + $0x38] sm:$0xf]
    %v1738 = vld [vmem:[%s17 + $0x3c] sm:$0xf]
    %v1739 = vld [vmem:[#allocation20] sm:$0x1]
    %v1741 = vperm.slane %v1739, 0
    %v1759 = vunpack.c.l.b16 %v1723
    %v1760 = vunpack.c.l.b16 %v1724
    %v1761 = vunpack.c.l.b16 %v1725
    %v1762 = vunpack.c.l.b16 %v1726
    %v1763 = vunpack.c.l.b16 %v1727
    %v1764 = vunpack.c.l.b16 %v1728
    %v1765 = vunpack.c.l.b16 %v1729
    %v1766 = vunpack.c.l.b16 %v1730
    %v1767 = vunpack.c.l.b16 %v1731
    %v1768 = vunpack.c.l.b16 %v1732
    %v1769 = vunpack.c.l.b16 %v1733
    %v1770 = vunpack.c.l.b16 %v1734
    %v1771 = vunpack.c.l.b16 %v1735
    %v1772 = vunpack.c.l.b16 %v1736
    %v1773 = vunpack.c.l.b16 %v1737
    %v1774 = vunpack.c.l.b16 %v1738
    %v1775 = vpack.c.b16 %v1760, %v1759
    %v1776 = vpack.c.b16 %v1762, %v1761
    %v1777 = vpack.c.b16 %v1764, %v1763
    %v1778 = vpack.c.b16 %v1766, %v1765
    %v1779 = vpack.c.b16 %v1768, %v1767
    %v1780 = vpack.c.b16 %v1770, %v1769
    %v1781 = vpack.c.b16 %v1772, %v1771
    %v1782 = vpack.c.b16 %v1774, %v1773
    %1791 = vmatpush.bf16.msra.mxu0 %v1782
    %1792 = vmatpush.bf16.msra.mxu0 %v1781
    %1793 = vmatpush.bf16.msra.mxu0 %v1780
    %1794 = vmatpush.bf16.msra.mxu0 %v1779
    %1795 = vmatpush.bf16.msra.mxu0 %v1778
    %1796 = vmatpush.bf16.msra.mxu0 %v1777
    %1797 = vmatpush.bf16.msra.mxu0 %v1776
    %1798 = vmatpush.bf16.msra.mxu0 %v1775
    %1799 = vmatmul.bf16.gmra.mxu0 %v1722
    %v1800 = vpop.f32.mrf.mxu0
    %v1801 = vadd.f32 %v1741, %v1800
    %v1802 = vpop.f32.mrf.mxu0
    %1803 = vdwg.mxu0
    %v1804 = vmax.f32 %v1801, 0.0
    %v1805 = vld [vmem:[#allocation22] sm:$0x1]
    %v1806 = vpack.c.bf16 %v1804, %v1804
    %v1807 = vld [vmem:[#allocation2] sm:$0x1]
    %1809 = vset.pattern.permute.xlu0 0
    %1810 = vperm.xlu0 %1809, %v1807
    %v1811 = vpop.permute.xlu0 %1810
    %v1813 = vperm.slane %v1811, 0
    %1814 = vmatpush.bf16.xpose.msra.mxu0 0
    %1815 = vmatpush.bf16.xpose.msra.mxu0 0
    %1816 = vmatpush.bf16.xpose.msra.mxu0 0
    %1817 = vmatpush.bf16.xpose.msra.mxu0 0
    %1818 = vmatpush.bf16.xpose.msra.mxu0 0
    %1819 = vmatpush.bf16.xpose.msra.mxu0 0
    %1820 = vmatpush.bf16.xpose.msra.mxu0 0
    %1821 = vmatpush.bf16.xpose.msra.mxu0 %v1806
    %1822 = vmatmul.bf16.gmra.mxu0 %v1805
    %v1823 = vpop.f32.mrf.mxu0
    %v1824 = vadd.f32 %v1813, %v1823
    %v1825 = vpop.f32.mrf.mxu0
    %1826 = vdwg.mxu0
    %v1827 = vmax.f32 %v1824, -60.0
    %v1828 = vsub.f32 0.0, %v1827
    %v1829 = vmul.f32 %v1828, 1.442695
    %v1830 = vpow.pop %v1829
    %v1831 = vadd.f32 %v1830, 1.0
    %v1832 = vrcp.pop %v1831
    %vm1833 = vcmask 57344
    %1834 = vst.msk [vmem:[%s21] sm:$0x1] %vm1833, %v1832
    // Predicated region
    $region138: #{forward.1} parent=1 // pred_check
      _
    $region139: #{forward.1} parent=1 // pred_check_branch
      %1836 = sbr.rel (0) target = $region141
    $region140: #{forward.1} parent=1 // pred_region
      _
    $region141: #{forward.1} parent=1 // pred_fallthru
      _
    // Predicated region
    $region142: #{forward.1} parent=1 // pred_check
      _
    $region143: #{forward.1} parent=1 // pred_check_branch
      %1838 = sbr.rel (0) target = $region145
    $region144: #{forward.1} parent=1 // pred_region
      _
    $region145: #{forward.1} parent=1 // pred_fallthru
      _
    %1839 = vsyncpa [#allocation4], 1
    %1840 = vsyncpa [#allocation6], 1
    %1841 = vsyncpa [#allocation9], 1
    %1842 = vsyncpa [#allocation12], 1
    %1843 = vsyncpa [#allocation15], 1
    %1844 = vsyncpa [#allocation18], 1
    %1845 = vsyncpa [#allocation21], 1

</llo_original>
